<compile_context>
chip_gen: v5e
topology: v5e:2x2
jax: 0.10.0
libtpu: 0.0.40
codegen_flags: <defaults>
</compile_context>

<pallas_src>
import jax
import jax.numpy as jnp
from jax.experimental import pallas as pl
from jax.experimental.pallas import tpu as pltpu


# --------------------------- small helpers ----------------------------------

def _round_up(n, m):
    return ((n + m - 1) // m) * m


def _pad_rows(a, rp):
    pad = rp - a.shape[0]
    return a if pad == 0 else jnp.pad(a, ((0, pad), (0, 0)))


def _sigmoid(v):
    # 0.5*tanh(0.5x)+0.5 == sigmoid(x); overflow-safe and EUP-friendly.
    return 0.5 * jnp.tanh(0.5 * v) + 0.5


def _gru_cell(x, h, wi, wh, bi, bh, d):
    """PyTorch GRUCell with fused (D, 3D) weights -> 2 matmuls per update.

    wi/wh: (D, 3D) columns packed [r | z | n]; bi/bh: (1, 3D).
    """
    gi = jnp.dot(x, wi, preferred_element_type=jnp.float32) + bi
    gh = jnp.dot(h, wh, preferred_element_type=jnp.float32) + bh
    r = _sigmoid(gi[:, :d] + gh[:, :d])
    z = _sigmoid(gi[:, d:2 * d] + gh[:, d:2 * d])
    n = jnp.tanh(gi[:, 2 * d:] + r * gh[:, 2 * d:])
    return (1.0 - z) * n + z * h


# --------------------------- fused Pallas kernel ----------------------------

def _fused_layers_kernel(
        x0_ref, e0_ref, dsts_ref, srcs_ref, dstl_ref,
        gwxi_ref, gwe_ref, gwxj_ref, gb_ref,
        nwi_ref, nwh_ref, nbi_ref, nbh_ref,
        ewi_ref, ewh_ref, ebi_ref, ebh_ref,
        x_ref, e_ref,
        agg_scr, cnt_scr, iota_lane_scr, iota_sub_scr):
    """grid = (num_layers, edge_tiles); x_ref/e_ref are VMEM-resident state."""
    d = x0_ref.shape[1]
    layer = pl.program_id(0)
    t = pl.program_id(1)
    last_t = pl.num_programs(1) - 1

    @pl.when(jnp.logical_and(layer == 0, t == 0))
    def _init_state():
        # grid-invariant node-id iotas, hoisted out of the per-tile body.
        iota_lane_scr[...] = jax.lax.broadcasted_iota(
            jnp.int32, iota_lane_scr.shape, 1)          # (TE, Np), ids on lanes
        iota_sub_scr[...] = jax.lax.broadcasted_iota(
            jnp.int32, iota_sub_scr.shape, 0)           # (Np, TE), ids on sublanes
        cnt_scr[...] = jnp.zeros_like(cnt_scr)
        # initial node GRU: x = GRU(x0, h=0), stays resident for all layers.
        x0 = x0_ref[...]
        x_ref[...] = _gru_cell(x0, jnp.zeros_like(x0), nwi_ref[...],
                               nwh_ref[...], nbi_ref[...], nbh_ref[...], d)

    @pl.when(layer == 0)
    def _init_edge_tile():
        # initial edge GRU for this tile: e = GRU(e0, h=0), stays resident.
        e0 = e0_ref[t]
        e_ref[t] = _gru_cell(e0, jnp.zeros_like(e0), ewi_ref[...],
                             ewh_ref[...], ebi_ref[...], ebh_ref[...], d)

    @pl.when(t == 0)
    def _reset_agg():
        agg_scr[...] = jnp.zeros_like(agg_scr)

    x_all = x_ref[...]                       # (Np, D) current node state
    ef = e_ref[t]                            # (TE, D) current edge state
    dst_s = dsts_ref[t]                      # (TE, 1) target ids (-1 = pad)
    src_s = srcs_ref[t]                      # (TE, 1) source ids (-1 = pad)
    dst_l = dstl_ref[t]                      # (1, TE) target ids (lane layout)

    # one-hot builds (VPU compares against the hoisted iotas)
    oh_dst = (iota_lane_scr[...] == dst_s).astype(jnp.float32)   # (TE, Np)
    oh_src = (iota_lane_scr[...] == src_s).astype(jnp.float32)   # (TE, Np)
    oh_agg = (iota_sub_scr[...] == dst_l).astype(jnp.float32)    # (Np, TE)

    # in-kernel gathers x_i = x[dst], x_j = x[src] as one-hot MXU matmuls
    x_i = jnp.dot(oh_dst, x_all, preferred_element_type=jnp.float32)
    x_j = jnp.dot(oh_src, x_all, preferred_element_type=jnp.float32)

    # four sigmoid gates in one packed matmul, columns replicated over D lanes:
    # blocks [subj_node | subj_edge | obj_node | obj_edge] -> (TE, 4D)
    gates = _sigmoid(
        jnp.dot(x_i, gwxi_ref[...], preferred_element_type=jnp.float32)
        + jnp.dot(ef, gwe_ref[...], preferred_element_type=jnp.float32)
        + jnp.dot(x_j, gwxj_ref[...], preferred_element_type=jnp.float32)
        + gb_ref[...])
    node_msg = (gates[:, :d] + gates[:, 2 * d:3 * d]) * ef        # to nodes
    edge_msg = gates[:, d:2 * d] * x_i + gates[:, 3 * d:] * x_j   # to edges

    # fused edge GRU update, written into the resident edge state.
    e_ref[t] = _gru_cell(edge_msg, ef, ewi_ref[...], ewh_ref[...],
                         ebi_ref[...], ebh_ref[...], d)

    # segment-sum of node messages via one-hot matmul (no serial scatter).
    agg_scr[...] += jnp.dot(oh_agg, node_msg,
                            preferred_element_type=jnp.float32)

    @pl.when(layer == 0)
    def _count():
        cnt_scr[...] += jnp.sum(oh_agg, axis=1, keepdims=True)

    @pl.when(jnp.logical_and(layer == 0, t == last_t))
    def _invert_counts():
        # in-degrees depend only on edge_index: invert once, reuse every layer.
        # TODO(synk): pl.reciprocal(approx=True) is possible but kept exact to
        # preserve the 5e-3 check margin (runs once per forward, negligible).
        cnt_scr[...] = 1.0 / jnp.maximum(cnt_scr[...], 1.0)

    @pl.when(t == last_t)
    def _node_update():
        # mean aggregation + fused node GRU epilogue: x' = GRU(mean_msg, x)
        mean_msg = agg_scr[...] * cnt_scr[...]
        x_ref[...] = _gru_cell(mean_msg, x_all, nwi_ref[...], nwh_ref[...],
                               nbi_ref[...], nbh_ref[...], d)


# --------------------------- kernel wrapper ---------------------------------

def _const_spec(shape):
    nd = len(shape)
    return pl.BlockSpec(shape, lambda *_: (0,) * nd)


def triplet_imp_pallas(params, node_x, edge_x, edge_index, *, num_layers,
                       max_edge_tile=512):
    """Full TripletIMP forward as a single fused pallas_call."""
    if num_layers < 1:
        raise ValueError("num_layers must be >= 1")
    n_nodes, d = node_x.shape
    n_edges = edge_x.shape[0]
    ng, eg, gw = params['node_gru'], params['edge_gru'], params['gates']

    np_ = _round_up(max(n_nodes, 8), 8)
    # minimal padding: round the per-tile size to 8, not to a full max tile.
    n_tiles = -(-n_edges // max_edge_tile)
    te = _round_up(-(-n_edges // n_tiles), 8)
    ep = te * n_tiles
    pad = ep - n_edges

    x0 = _pad_rows(node_x, np_)
    e0 = _pad_rows(edge_x, ep).reshape(n_tiles, te, d)

    dst = edge_index[1].astype(jnp.int32)   # target (x_i, aggregation index)
    src = edge_index[0].astype(jnp.int32)   # source (x_j)
    if pad:
        fill = jnp.full((pad,), -1, jnp.int32)   # sentinel: matches no node id
        dst = jnp.concatenate([dst, fill])
        src = jnp.concatenate([src, fill])
    dst_sub = dst.reshape(n_tiles, te, 1)
    src_sub = src.reshape(n_tiles, te, 1)
    dst_lane = dst.reshape(n_tiles, 1, te)

    operands = (x0, e0, dst_sub, src_sub, dst_lane,
                gw['wxi'], gw['we'], gw['wxj'], gw['b'],
                ng['wi'], ng['wh'], ng['bi'], ng['bh'],
                eg['wi'], eg['wh'], eg['bi'], eg['bh'])
    in_specs = [_const_spec(a.shape) for a in operands]

    out_x, out_e = pl.pallas_call(
        _fused_layers_kernel,
        out_shape=(jax.ShapeDtypeStruct((np_, d), jnp.float32),
                   jax.ShapeDtypeStruct((n_tiles, te, d), jnp.float32)),
        grid=(num_layers, n_tiles),
        in_specs=in_specs,
        out_specs=(_const_spec((np_, d)), _const_spec((n_tiles, te, d))),
        scratch_shapes=[pltpu.VMEM((np_, d), jnp.float32),   # node msg accum
                        pltpu.VMEM((np_, 1), jnp.float32),   # 1/in-degree
                        pltpu.VMEM((te, np_), jnp.int32),    # node ids (lanes)
                        pltpu.VMEM((np_, te), jnp.int32)],   # node ids (sublanes)
        compiler_params=pltpu.CompilerParams(
            dimension_semantics=("arbitrary", "arbitrary")),
    )(*operands)

    x_out = out_x[:n_nodes]
    e_out = out_e.reshape(ep, d)[:n_edges]
    return x_out, e_out


# --------------------------- parameters -------------------------------------

def init_raw_params(key, dim_node):
    ks = iter(jax.random.split(key, 32))

    def lin(o, i, scale=0.1):
        w = scale * jax.random.normal(next(ks), (o, i), jnp.float32)
        b = scale * jax.random.normal(next(ks), (o,), jnp.float32)
        return w, b

    def gru(d):
        w_ih, b_ih = lin(3 * d, d)
        w_hh, b_hh = lin(3 * d, d)
        return {'w_ih': w_ih, 'w_hh': w_hh, 'b_ih': b_ih, 'b_hh': b_hh}

    gates = {}
    for name in ('sn', 'se', 'on', 'oe'):
        w, b = lin(1, 2 * dim_node)
        gates['w_' + name] = w
        gates['b_' + name] = b
    return {'node_gru': gru(dim_node), 'edge_gru': gru(dim_node),
            'gates': gates}


def prep_gru(p):
    # fused (D, 3D) weights: x @ wi gives [r | z | n] in one matmul.
    return {'wi': jnp.asarray(p['w_ih'].T), 'wh': jnp.asarray(p['w_hh'].T),
            'bi': p['b_ih'].reshape(1, -1), 'bh': p['b_hh'].reshape(1, -1)}


def prep_gates(g, d):
    # Each gate column replicated over its D-lane group -> (D, 4D) packed
    # weights; gate blocks: [subj_node | subj_edge | obj_node | obj_edge].
    def rep(vec):  # (d,) -> (d, d): every column == vec
        return jnp.broadcast_to(vec[:, None], (d, d)).astype(jnp.float32)

    z = jnp.zeros((d, d), jnp.float32)
    wxi = jnp.concatenate([rep(g['w_sn'][0, :d]), rep(g['w_se'][0, :d]),
                           z, z], axis=1)
    we = jnp.concatenate([rep(g['w_sn'][0, d:]), rep(g['w_se'][0, d:]),
                          rep(g['w_on'][0, d:]), rep(g['w_oe'][0, d:])], axis=1)
    wxj = jnp.concatenate([z, z, rep(g['w_on'][0, :d]),
                           rep(g['w_oe'][0, :d])], axis=1)
    b = jnp.concatenate([jnp.full((d,), g['b_sn'][0], jnp.float32),
                         jnp.full((d,), g['b_se'][0], jnp.float32),
                         jnp.full((d,), g['b_on'][0], jnp.float32),
                         jnp.full((d,), g['b_oe'][0], jnp.float32)]
                        ).reshape(1, 4 * d)
    return {'wxi': wxi, 'we': we, 'wxj': wxj, 'b': b}


def prep_params(raw, d):
    return {'node_gru': prep_gru(raw['node_gru']),
            'edge_gru': prep_gru(raw['edge_gru']),
            'gates': prep_gates(raw['gates'], d)}


# --------------------------- pure-JAX reference -----------------------------

def _ref_gru(x, h, p):
    gi = x @ p['w_ih'].T + p['b_ih']
    gh = h @ p['w_hh'].T + p['b_hh']
    d = h.shape[1]
    r = jax.nn.sigmoid(gi[:, :d] + gh[:, :d])
    z = jax.nn.sigmoid(gi[:, d:2 * d] + gh[:, d:2 * d])
    n = jnp.tanh(gi[:, 2 * d:] + r * gh[:, 2 * d:])
    return (1.0 - z) * n + z * h


def _ref_msg(g, x, ef, edge_index):
    src, dst = edge_index[0], edge_index[1]
    x_i, x_j = x[dst], x[src]

    def gate(w, b, a):
        return jax.nn.sigmoid(a @ w.T + b)

    cat_i = jnp.concatenate([x_i, ef], axis=1)
    cat_j = jnp.concatenate([x_j, ef], axis=1)
    node_message = (gate(g['w_sn'], g['b_sn'], cat_i) * ef
                    + gate(g['w_on'], g['b_on'], cat_j) * ef)
    edge_message = (gate(g['w_se'], g['b_se'], cat_i) * x_i
                    + gate(g['w_oe'], g['b_oe'], cat_j) * x_j)
    n_nodes = x.shape[0]
    sums = jax.ops.segment_sum(node_message, dst, num_segments=n_nodes)
    cnt = jax.ops.segment_sum(jnp.ones((dst.shape[0], 1), jnp.float32), dst,
                              num_segments=n_nodes)
    return sums / jnp.maximum(cnt, 1.0), edge_message


def triplet_imp_ref(raw, node_x, edge_x, edge_index, num_layers):
    x = _ref_gru(node_x, jnp.zeros_like(node_x), raw['node_gru'])
    e = _ref_gru(edge_x, jnp.zeros_like(edge_x), raw['edge_gru'])
    for _ in range(num_layers):
        node_msg, edge_msg = _ref_msg(raw['gates'], x, e, edge_index)
        x = _ref_gru(node_msg, x, raw['node_gru'])
        e = _ref_gru(edge_msg, e, raw['edge_gru'])
    return x, e


# --------------------------- main -------------------------------------------

if __name__ == "__main__":
    dim_node = 32
    num_layers = 2
    N, E = 8, 16

    key = jax.random.PRNGKey(0)
    kp, kn, ke, ki = jax.random.split(key, 4)
    raw = init_raw_params(kp, dim_node)
    params = prep_params(raw, dim_node)

    node_x = jax.random.normal(kn, (N, dim_node), jnp.float32)
    edge_x = jax.random.normal(ke, (E, dim_node), jnp.float32)
    edge_index = jax.random.randint(ki, (2, E), 0, N, dtype=jnp.int32)

    # max_edge_tile=8 at this toy size so the demo exercises the multi-tile
    # accumulation / resident-state path (production default is 512).
    fwd = jax.jit(triplet_imp_pallas,
                  static_argnames=('num_layers', 'max_edge_tile'))
    node_out, edge_out = fwd(params, node_x, edge_x, edge_index,
                             num_layers=num_layers, max_edge_tile=8)
    node_out = jax.block_until_ready(node_out)
    edge_out = jax.block_until_ready(edge_out)

    # check against a pure-JAX reference of the PyTorch semantics.
    rn, re = triplet_imp_ref(raw, node_x, edge_x, edge_index, num_layers)
    assert node_out.shape == rn.shape and edge_out.shape == re.shape
    err_n = float(jnp.max(jnp.abs(node_out - rn)))
    err_e = float(jnp.max(jnp.abs(edge_out - re)))
    assert err_n < 5e-3, err_n
    assert err_e < 5e-3, err_e

    print("KERNEL_OK")
</pallas_src>

<mosaic_0001>
module attributes {stable_mosaic.version = 11 : i64} {
  func.func @_fused_layers_kernel(%arg0: i32, %arg1: i32, %arg2: memref<8x32xf32, #tpu.memory_space<vmem>>, %arg3: memref<2x8x32xf32, #tpu.memory_space<vmem>>, %arg4: memref<2x8x1xi32, #tpu.memory_space<vmem>>, %arg5: memref<2x8x1xi32, #tpu.memory_space<vmem>>, %arg6: memref<2x1x8xi32, #tpu.memory_space<vmem>>, %arg7: memref<32x128xf32, #tpu.memory_space<vmem>>, %arg8: memref<32x128xf32, #tpu.memory_space<vmem>>, %arg9: memref<32x128xf32, #tpu.memory_space<vmem>>, %arg10: memref<1x128xf32, #tpu.memory_space<vmem>>, %arg11: memref<32x96xf32, #tpu.memory_space<vmem>>, %arg12: memref<32x96xf32, #tpu.memory_space<vmem>>, %arg13: memref<1x96xf32, #tpu.memory_space<vmem>>, %arg14: memref<1x96xf32, #tpu.memory_space<vmem>>, %arg15: memref<32x96xf32, #tpu.memory_space<vmem>>, %arg16: memref<32x96xf32, #tpu.memory_space<vmem>>, %arg17: memref<1x96xf32, #tpu.memory_space<vmem>>, %arg18: memref<1x96xf32, #tpu.memory_space<vmem>>, %arg19: memref<8x32xf32, #tpu.memory_space<vmem>>, %arg20: memref<2x8x32xf32, #tpu.memory_space<vmem>>, %arg21: memref<8x32xf32, #tpu.memory_space<vmem>>, %arg22: memref<8x1xf32, #tpu.memory_space<vmem>>, %arg23: memref<8x8xi32, #tpu.memory_space<vmem>>, %arg24: memref<8x8xi32, #tpu.memory_space<vmem>>) attributes {dimension_semantics = [#tpu.dimension_semantics<arbitrary>, #tpu.dimension_semantics<arbitrary>], iteration_bounds = array<i64: 2, 2>, scalar_prefetch = 0 : i64, scratch_operands = 4 : i64, tpu.core_type = #tpu.core_type<tc>, window_params = [{pipeline_mode = #tpu.pipeline_mode<synchronous>, transform_indices = @transform_0, window_bounds = array<i64: 8, 32>}, {pipeline_mode = #tpu.pipeline_mode<synchronous>, transform_indices = @transform_1, window_bounds = array<i64: 2, 8, 32>}, {pipeline_mode = #tpu.pipeline_mode<synchronous>, transform_indices = @transform_2, window_bounds = array<i64: 2, 8, 1>}, {pipeline_mode = #tpu.pipeline_mode<synchronous>, transform_indices = @transform_3, window_bounds = array<i64: 2, 8, 1>}, {pipeline_mode = #tpu.pipeline_mode<synchronous>, transform_indices = @transform_4, window_bounds = array<i64: 2, 1, 8>}, {pipeline_mode = #tpu.pipeline_mode<synchronous>, transform_indices = @transform_5, window_bounds = array<i64: 32, 128>}, {pipeline_mode = #tpu.pipeline_mode<synchronous>, transform_indices = @transform_6, window_bounds = array<i64: 32, 128>}, {pipeline_mode = #tpu.pipeline_mode<synchronous>, transform_indices = @transform_7, window_bounds = array<i64: 32, 128>}, {pipeline_mode = #tpu.pipeline_mode<synchronous>, transform_indices = @transform_8, window_bounds = array<i64: 1, 128>}, {pipeline_mode = #tpu.pipeline_mode<synchronous>, transform_indices = @transform_9, window_bounds = array<i64: 32, 96>}, {pipeline_mode = #tpu.pipeline_mode<synchronous>, transform_indices = @transform_10, window_bounds = array<i64: 32, 96>}, {pipeline_mode = #tpu.pipeline_mode<synchronous>, transform_indices = @transform_11, window_bounds = array<i64: 1, 96>}, {pipeline_mode = #tpu.pipeline_mode<synchronous>, transform_indices = @transform_12, window_bounds = array<i64: 1, 96>}, {pipeline_mode = #tpu.pipeline_mode<synchronous>, transform_indices = @transform_13, window_bounds = array<i64: 32, 96>}, {pipeline_mode = #tpu.pipeline_mode<synchronous>, transform_indices = @transform_14, window_bounds = array<i64: 32, 96>}, {pipeline_mode = #tpu.pipeline_mode<synchronous>, transform_indices = @transform_15, window_bounds = array<i64: 1, 96>}, {pipeline_mode = #tpu.pipeline_mode<synchronous>, transform_indices = @transform_16, window_bounds = array<i64: 1, 96>}, {pipeline_mode = #tpu.pipeline_mode<synchronous>, transform_indices = @transform_17, window_bounds = array<i64: 8, 32>}, {pipeline_mode = #tpu.pipeline_mode<synchronous>, transform_indices = @transform_18, window_bounds = array<i64: 2, 8, 32>}]} {
    %c0_i32 = arith.constant 0 : i32
    %0 = arith.cmpi eq, %arg0, %c0_i32 : i32
    %c0_i32_0 = arith.constant 0 : i32
    %1 = arith.cmpi eq, %arg1, %c0_i32_0 : i32
    %2 = arith.andi %0, %1 : i1
    %3 = arith.extui %2 : i1 to i32
    %c0_i32_1 = arith.constant 0 : i32
    %4 = arith.cmpi ne, %3, %c0_i32_1 : i32
    scf.if %4 {
      %127 = tpu.iota {dimensions = array<i32: 1>} : vector<8x8xi32>
      %c0_66 = arith.constant 0 : index
      %c0_67 = arith.constant 0 : index
      %128 = vector.load %arg23[%c0_66, %c0_67] : memref<8x8xi32, #tpu.memory_space<vmem>>, vector<8x8xi32>
      tpu.vector_store %arg23[%c0_66, %c0_67], %127 {strides = array<i32>} : memref<8x8xi32, #tpu.memory_space<vmem>>, vector<8x8xi32>,
      %129 = tpu.iota {dimensions = array<i32: 0>} : vector<8x8xi32>
      %c0_68 = arith.constant 0 : index
      %c0_69 = arith.constant 0 : index
      %130 = vector.load %arg24[%c0_68, %c0_69] : memref<8x8xi32, #tpu.memory_space<vmem>>, vector<8x8xi32>
      tpu.vector_store %arg24[%c0_68, %c0_69], %129 {strides = array<i32>} : memref<8x8xi32, #tpu.memory_space<vmem>>, vector<8x8xi32>,
      %cst_70 = arith.constant 0.000000e+00 : f32
      %131 = vector.broadcast %cst_70 : f32 to vector<8x1xf32>
      %c0_71 = arith.constant 0 : index
      %c0_72 = arith.constant 0 : index
      %132 = vector.load %arg22[%c0_71, %c0_72] : memref<8x1xf32, #tpu.memory_space<vmem>>, vector<8x1xf32>
      tpu.vector_store %arg22[%c0_71, %c0_72], %131 {strides = array<i32>} : memref<8x1xf32, #tpu.memory_space<vmem>>, vector<8x1xf32>,
      %c0_73 = arith.constant 0 : index
      %c0_74 = arith.constant 0 : index
      %133 = vector.load %arg2[%c0_73, %c0_74] : memref<8x32xf32, #tpu.memory_space<vmem>>, vector<8x32xf32>
      %cst_75 = arith.constant 0.000000e+00 : f32
      %134 = vector.broadcast %cst_75 : f32 to vector<8x32xf32>
      %c0_76 = arith.constant 0 : index
      %c0_77 = arith.constant 0 : index
      %135 = vector.load %arg11[%c0_76, %c0_77] : memref<32x96xf32, #tpu.memory_space<vmem>>, vector<32x96xf32>
      %c0_78 = arith.constant 0 : index
      %c0_79 = arith.constant 0 : index
      %136 = vector.load %arg12[%c0_78, %c0_79] : memref<32x96xf32, #tpu.memory_space<vmem>>, vector<32x96xf32>
      %c0_80 = arith.constant 0 : index
      %c0_81 = arith.constant 0 : index
      %137 = vector.load %arg13[%c0_80, %c0_81] : memref<1x96xf32, #tpu.memory_space<vmem>>, vector<1x96xf32>
      %c0_82 = arith.constant 0 : index
      %c0_83 = arith.constant 0 : index
      %138 = vector.load %arg14[%c0_82, %c0_83] : memref<1x96xf32, #tpu.memory_space<vmem>>, vector<1x96xf32>
      %cst_84 = arith.constant dense<0.000000e+00> : vector<8x96xf32>
      %139 = tpu.matmul %133, %135, %cst_84 {dimension_numbers = #tpu.dot_dimension_numbers<[1], [0], [0], [1], [0, 0, 1, 1], [], []>} : vector<8x32xf32>, vector<32x96xf32>, vector<8x96xf32> -> vector<8x96xf32>
      %140 = vector.broadcast %137 : vector<1x96xf32> to vector<8x96xf32>
      %141 = arith.addf %139, %140 : vector<8x96xf32>
      %cst_85 = arith.constant dense<0.000000e+00> : vector<8x96xf32>
      %142 = tpu.matmul %134, %136, %cst_85 {dimension_numbers = #tpu.dot_dimension_numbers<[1], [0], [0], [1], [0, 0, 1, 1], [], []>} : vector<8x32xf32>, vector<32x96xf32>, vector<8x96xf32> -> vector<8x96xf32>
      %143 = vector.broadcast %138 : vector<1x96xf32> to vector<8x96xf32>
      %144 = arith.addf %142, %143 : vector<8x96xf32>
      %145 = vector.extract_strided_slice %141 {offsets = [0, 0], sizes = [8, 32], strides = [1, 1]} : vector<8x96xf32> to vector<8x32xf32>
      %146 = vector.extract_strided_slice %144 {offsets = [0, 0], sizes = [8, 32], strides = [1, 1]} : vector<8x96xf32> to vector<8x32xf32>
      %147 = arith.addf %145, %146 : vector<8x32xf32>
      %cst_86 = arith.constant 5.000000e-01 : f32
      %148 = vector.broadcast %cst_86 : f32 to vector<8x32xf32>
      %149 = arith.mulf %148, %147 : vector<8x32xf32>
      %150 = math.tanh %149 : vector<8x32xf32>
      %cst_87 = arith.constant 5.000000e-01 : f32
      %151 = vector.broadcast %cst_87 : f32 to vector<8x32xf32>
      %152 = arith.mulf %151, %150 : vector<8x32xf32>
      %cst_88 = arith.constant 5.000000e-01 : f32
      %153 = vector.broadcast %cst_88 : f32 to vector<8x32xf32>
      %154 = arith.addf %152, %153 : vector<8x32xf32>
      %155 = vector.extract_strided_slice %141 {offsets = [0, 32], sizes = [8, 32], strides = [1, 1]} : vector<8x96xf32> to vector<8x32xf32>
      %156 = vector.extract_strided_slice %144 {offsets = [0, 32], sizes = [8, 32], strides = [1, 1]} : vector<8x96xf32> to vector<8x32xf32>
      %157 = arith.addf %155, %156 : vector<8x32xf32>
      %cst_89 = arith.constant 5.000000e-01 : f32
      %158 = vector.broadcast %cst_89 : f32 to vector<8x32xf32>
      %159 = arith.mulf %158, %157 : vector<8x32xf32>
      %160 = math.tanh %159 : vector<8x32xf32>
      %cst_90 = arith.constant 5.000000e-01 : f32
      %161 = vector.broadcast %cst_90 : f32 to vector<8x32xf32>
      %162 = arith.mulf %161, %160 : vector<8x32xf32>
      %cst_91 = arith.constant 5.000000e-01 : f32
      %163 = vector.broadcast %cst_91 : f32 to vector<8x32xf32>
      %164 = arith.addf %162, %163 : vector<8x32xf32>
      %165 = vector.extract_strided_slice %141 {offsets = [0, 64], sizes = [8, 32], strides = [1, 1]} : vector<8x96xf32> to vector<8x32xf32>
      %166 = vector.extract_strided_slice %144 {offsets = [0, 64], sizes = [8, 32], strides = [1, 1]} : vector<8x96xf32> to vector<8x32xf32>
      %167 = arith.mulf %154, %166 : vector<8x32xf32>
      %168 = arith.addf %165, %167 : vector<8x32xf32>
      %169 = math.tanh %168 : vector<8x32xf32>
      %cst_92 = arith.constant 1.000000e+00 : f32
      %170 = vector.broadcast %cst_92 : f32 to vector<8x32xf32>
      %171 = arith.subf %170, %164 : vector<8x32xf32>
      %172 = arith.mulf %171, %169 : vector<8x32xf32>
      %173 = arith.mulf %164, %134 : vector<8x32xf32>
      %174 = arith.addf %172, %173 : vector<8x32xf32>
      %c0_93 = arith.constant 0 : index
      %c0_94 = arith.constant 0 : index
      %175 = vector.load %arg19[%c0_93, %c0_94] : memref<8x32xf32, #tpu.memory_space<vmem>>, vector<8x32xf32>
      tpu.vector_store %arg19[%c0_93, %c0_94], %174 {strides = array<i32>} : memref<8x32xf32, #tpu.memory_space<vmem>>, vector<8x32xf32>,
    } else {
    }
    %c0_i32_2 = arith.constant 0 : i32
    %5 = arith.cmpi eq, %arg0, %c0_i32_2 : i32
    %6 = arith.extui %5 : i1 to i32
    %c0_i32_3 = arith.constant 0 : i32
    %7 = arith.cmpi ne, %6, %c0_i32_3 : i32
    scf.if %7 {
      %127 = arith.index_cast %arg1 : i32 to index
      %c0_66 = arith.constant 0 : index
      %c0_67 = arith.constant 0 : index
      %128 = vector.load %arg3[%127, %c0_66, %c0_67] : memref<2x8x32xf32, #tpu.memory_space<vmem>>, vector<1x8x32xf32>
      %129 = vector.shape_cast %128 : vector<1x8x32xf32> to vector<8x32xf32>
      %cst_68 = arith.constant 0.000000e+00 : f32
      %130 = vector.broadcast %cst_68 : f32 to vector<8x32xf32>
      %c0_69 = arith.constant 0 : index
      %c0_70 = arith.constant 0 : index
      %131 = vector.load %arg15[%c0_69, %c0_70] : memref<32x96xf32, #tpu.memory_space<vmem>>, vector<32x96xf32>
      %c0_71 = arith.constant 0 : index
      %c0_72 = arith.constant 0 : index
      %132 = vector.load %arg16[%c0_71, %c0_72] : memref<32x96xf32, #tpu.memory_space<vmem>>, vector<32x96xf32>
      %c0_73 = arith.constant 0 : index
      %c0_74 = arith.constant 0 : index
      %133 = vector.load %arg17[%c0_73, %c0_74] : memref<1x96xf32, #tpu.memory_space<vmem>>, vector<1x96xf32>
      %c0_75 = arith.constant 0 : index
      %c0_76 = arith.constant 0 : index
      %134 = vector.load %arg18[%c0_75, %c0_76] : memref<1x96xf32, #tpu.memory_space<vmem>>, vector<1x96xf32>
      %cst_77 = arith.constant dense<0.000000e+00> : vector<8x96xf32>
      %135 = tpu.matmul %129, %131, %cst_77 {dimension_numbers = #tpu.dot_dimension_numbers<[1], [0], [0], [1], [0, 0, 1, 1], [], []>} : vector<8x32xf32>, vector<32x96xf32>, vector<8x96xf32> -> vector<8x96xf32>
      %136 = vector.broadcast %133 : vector<1x96xf32> to vector<8x96xf32>
      %137 = arith.addf %135, %136 : vector<8x96xf32>
      %cst_78 = arith.constant dense<0.000000e+00> : vector<8x96xf32>
      %138 = tpu.matmul %130, %132, %cst_78 {dimension_numbers = #tpu.dot_dimension_numbers<[1], [0], [0], [1], [0, 0, 1, 1], [], []>} : vector<8x32xf32>, vector<32x96xf32>, vector<8x96xf32> -> vector<8x96xf32>
      %139 = vector.broadcast %134 : vector<1x96xf32> to vector<8x96xf32>
      %140 = arith.addf %138, %139 : vector<8x96xf32>
      %141 = vector.extract_strided_slice %137 {offsets = [0, 0], sizes = [8, 32], strides = [1, 1]} : vector<8x96xf32> to vector<8x32xf32>
      %142 = vector.extract_strided_slice %140 {offsets = [0, 0], sizes = [8, 32], strides = [1, 1]} : vector<8x96xf32> to vector<8x32xf32>
      %143 = arith.addf %141, %142 : vector<8x32xf32>
      %cst_79 = arith.constant 5.000000e-01 : f32
      %144 = vector.broadcast %cst_79 : f32 to vector<8x32xf32>
      %145 = arith.mulf %144, %143 : vector<8x32xf32>
      %146 = math.tanh %145 : vector<8x32xf32>
      %cst_80 = arith.constant 5.000000e-01 : f32
      %147 = vector.broadcast %cst_80 : f32 to vector<8x32xf32>
      %148 = arith.mulf %147, %146 : vector<8x32xf32>
      %cst_81 = arith.constant 5.000000e-01 : f32
      %149 = vector.broadcast %cst_81 : f32 to vector<8x32xf32>
      %150 = arith.addf %148, %149 : vector<8x32xf32>
      %151 = vector.extract_strided_slice %137 {offsets = [0, 32], sizes = [8, 32], strides = [1, 1]} : vector<8x96xf32> to vector<8x32xf32>
      %152 = vector.extract_strided_slice %140 {offsets = [0, 32], sizes = [8, 32], strides = [1, 1]} : vector<8x96xf32> to vector<8x32xf32>
      %153 = arith.addf %151, %152 : vector<8x32xf32>
      %cst_82 = arith.constant 5.000000e-01 : f32
      %154 = vector.broadcast %cst_82 : f32 to vector<8x32xf32>
      %155 = arith.mulf %154, %153 : vector<8x32xf32>
      %156 = math.tanh %155 : vector<8x32xf32>
      %cst_83 = arith.constant 5.000000e-01 : f32
      %157 = vector.broadcast %cst_83 : f32 to vector<8x32xf32>
      %158 = arith.mulf %157, %156 : vector<8x32xf32>
      %cst_84 = arith.constant 5.000000e-01 : f32
      %159 = vector.broadcast %cst_84 : f32 to vector<8x32xf32>
      %160 = arith.addf %158, %159 : vector<8x32xf32>
      %161 = vector.extract_strided_slice %137 {offsets = [0, 64], sizes = [8, 32], strides = [1, 1]} : vector<8x96xf32> to vector<8x32xf32>
      %162 = vector.extract_strided_slice %140 {offsets = [0, 64], sizes = [8, 32], strides = [1, 1]} : vector<8x96xf32> to vector<8x32xf32>
      %163 = arith.mulf %150, %162 : vector<8x32xf32>
      %164 = arith.addf %161, %163 : vector<8x32xf32>
      %165 = math.tanh %164 : vector<8x32xf32>
      %cst_85 = arith.constant 1.000000e+00 : f32
      %166 = vector.broadcast %cst_85 : f32 to vector<8x32xf32>
      %167 = arith.subf %166, %160 : vector<8x32xf32>
      %168 = arith.mulf %167, %165 : vector<8x32xf32>
      %169 = arith.mulf %160, %130 : vector<8x32xf32>
      %170 = arith.addf %168, %169 : vector<8x32xf32>
      %171 = arith.index_cast %arg1 : i32 to index
      %c0_86 = arith.constant 0 : index
      %c0_87 = arith.constant 0 : index
      %172 = vector.load %arg20[%171, %c0_86, %c0_87] : memref<2x8x32xf32, #tpu.memory_space<vmem>>, vector<1x8x32xf32>
      %173 = vector.shape_cast %172 : vector<1x8x32xf32> to vector<8x32xf32>
      %174 = vector.shape_cast %170 : vector<8x32xf32> to vector<1x8x32xf32>
      tpu.vector_store %arg20[%171, %c0_86, %c0_87], %174 {strides = array<i32>} : memref<2x8x32xf32, #tpu.memory_space<vmem>>, vector<1x8x32xf32>,
    } else {
    }
    %c0_i32_4 = arith.constant 0 : i32
    %8 = arith.cmpi eq, %arg1, %c0_i32_4 : i32
    %9 = arith.extui %8 : i1 to i32
    %c0_i32_5 = arith.constant 0 : i32
    %10 = arith.cmpi ne, %9, %c0_i32_5 : i32
    scf.if %10 {
      %cst_66 = arith.constant 0.000000e+00 : f32
      %127 = vector.broadcast %cst_66 : f32 to vector<8x32xf32>
      %c0_67 = arith.constant 0 : index
      %c0_68 = arith.constant 0 : index
      %128 = vector.load %arg21[%c0_67, %c0_68] : memref<8x32xf32, #tpu.memory_space<vmem>>, vector<8x32xf32>
      tpu.vector_store %arg21[%c0_67, %c0_68], %127 {strides = array<i32>} : memref<8x32xf32, #tpu.memory_space<vmem>>, vector<8x32xf32>,
    } else {
    }
    %c0 = arith.constant 0 : index
    %c0_6 = arith.constant 0 : index
    %11 = vector.load %arg19[%c0, %c0_6] : memref<8x32xf32, #tpu.memory_space<vmem>>, vector<8x32xf32>
    %12 = arith.index_cast %arg1 : i32 to index
    %c0_7 = arith.constant 0 : index
    %c0_8 = arith.constant 0 : index
    %13 = vector.load %arg20[%12, %c0_7, %c0_8] : memref<2x8x32xf32, #tpu.memory_space<vmem>>, vector<1x8x32xf32>
    %14 = vector.shape_cast %13 : vector<1x8x32xf32> to vector<8x32xf32>
    %15 = arith.index_cast %arg1 : i32 to index
    %c0_9 = arith.constant 0 : index
    %c0_10 = arith.constant 0 : index
    %16 = vector.load %arg4[%15, %c0_9, %c0_10] : memref<2x8x1xi32, #tpu.memory_space<vmem>>, vector<1x8x1xi32>
    %17 = vector.shape_cast %16 : vector<1x8x1xi32> to vector<8x1xi32>
    %18 = arith.index_cast %arg1 : i32 to index
    %c0_11 = arith.constant 0 : index
    %c0_12 = arith.constant 0 : index
    %19 = vector.load %arg5[%18, %c0_11, %c0_12] : memref<2x8x1xi32, #tpu.memory_space<vmem>>, vector<1x8x1xi32>
    %20 = vector.shape_cast %19 : vector<1x8x1xi32> to vector<8x1xi32>
    %21 = arith.index_cast %arg1 : i32 to index
    %c0_13 = arith.constant 0 : index
    %c0_14 = arith.constant 0 : index
    %22 = vector.load %arg6[%21, %c0_13, %c0_14] : memref<2x1x8xi32, #tpu.memory_space<vmem>>, vector<1x1x8xi32>
    %23 = vector.shape_cast %22 : vector<1x1x8xi32> to vector<1x8xi32>
    %c0_15 = arith.constant 0 : index
    %c0_16 = arith.constant 0 : index
    %24 = vector.load %arg23[%c0_15, %c0_16] : memref<8x8xi32, #tpu.memory_space<vmem>>, vector<8x8xi32>
    %25 = vector.broadcast %17 : vector<8x1xi32> to vector<8x8xi32>
    %26 = arith.cmpi eq, %24, %25 : vector<8x8xi32>
    %27 = arith.extui %26 : vector<8x8xi1> to vector<8x8xi32>
    %28 = arith.sitofp %27 : vector<8x8xi32> to vector<8x8xf32>
    %c0_17 = arith.constant 0 : index
    %c0_18 = arith.constant 0 : index
    %29 = vector.load %arg23[%c0_17, %c0_18] : memref<8x8xi32, #tpu.memory_space<vmem>>, vector<8x8xi32>
    %30 = vector.broadcast %20 : vector<8x1xi32> to vector<8x8xi32>
    %31 = arith.cmpi eq, %29, %30 : vector<8x8xi32>
    %32 = arith.extui %31 : vector<8x8xi1> to vector<8x8xi32>
    %33 = arith.sitofp %32 : vector<8x8xi32> to vector<8x8xf32>
    %c0_19 = arith.constant 0 : index
    %c0_20 = arith.constant 0 : index
    %34 = vector.load %arg24[%c0_19, %c0_20] : memref<8x8xi32, #tpu.memory_space<vmem>>, vector<8x8xi32>
    %35 = vector.broadcast %23 : vector<1x8xi32> to vector<8x8xi32>
    %36 = arith.cmpi eq, %34, %35 : vector<8x8xi32>
    %37 = arith.extui %36 : vector<8x8xi1> to vector<8x8xi32>
    %38 = arith.sitofp %37 : vector<8x8xi32> to vector<8x8xf32>
    %cst = arith.constant dense<0.000000e+00> : vector<8x32xf32>
    %39 = tpu.matmul %28, %11, %cst {dimension_numbers = #tpu.dot_dimension_numbers<[1], [0], [0], [1], [0, 0, 1, 1], [], []>} : vector<8x8xf32>, vector<8x32xf32>, vector<8x32xf32> -> vector<8x32xf32>
    %cst_21 = arith.constant dense<0.000000e+00> : vector<8x32xf32>
    %40 = tpu.matmul %33, %11, %cst_21 {dimension_numbers = #tpu.dot_dimension_numbers<[1], [0], [0], [1], [0, 0, 1, 1], [], []>} : vector<8x8xf32>, vector<8x32xf32>, vector<8x32xf32> -> vector<8x32xf32>
    %c0_22 = arith.constant 0 : index
    %c0_23 = arith.constant 0 : index
    %41 = vector.load %arg7[%c0_22, %c0_23] : memref<32x128xf32, #tpu.memory_space<vmem>>, vector<32x128xf32>
    %cst_24 = arith.constant dense<0.000000e+00> : vector<8x128xf32>
    %42 = tpu.matmul %39, %41, %cst_24 {dimension_numbers = #tpu.dot_dimension_numbers<[1], [0], [0], [1], [0, 0, 1, 1], [], []>} : vector<8x32xf32>, vector<32x128xf32>, vector<8x128xf32> -> vector<8x128xf32>
    %c0_25 = arith.constant 0 : index
    %c0_26 = arith.constant 0 : index
    %43 = vector.load %arg8[%c0_25, %c0_26] : memref<32x128xf32, #tpu.memory_space<vmem>>, vector<32x128xf32>
    %cst_27 = arith.constant dense<0.000000e+00> : vector<8x128xf32>
    %44 = tpu.matmul %14, %43, %cst_27 {dimension_numbers = #tpu.dot_dimension_numbers<[1], [0], [0], [1], [0, 0, 1, 1], [], []>} : vector<8x32xf32>, vector<32x128xf32>, vector<8x128xf32> -> vector<8x128xf32>
    %45 = arith.addf %42, %44 : vector<8x128xf32>
    %c0_28 = arith.constant 0 : index
    %c0_29 = arith.constant 0 : index
    %46 = vector.load %arg9[%c0_28, %c0_29] : memref<32x128xf32, #tpu.memory_space<vmem>>, vector<32x128xf32>
    %cst_30 = arith.constant dense<0.000000e+00> : vector<8x128xf32>
    %47 = tpu.matmul %40, %46, %cst_30 {dimension_numbers = #tpu.dot_dimension_numbers<[1], [0], [0], [1], [0, 0, 1, 1], [], []>} : vector<8x32xf32>, vector<32x128xf32>, vector<8x128xf32> -> vector<8x128xf32>
    %48 = arith.addf %45, %47 : vector<8x128xf32>
    %c0_31 = arith.constant 0 : index
    %c0_32 = arith.constant 0 : index
    %49 = vector.load %arg10[%c0_31, %c0_32] : memref<1x128xf32, #tpu.memory_space<vmem>>, vector<1x128xf32>
    %50 = vector.broadcast %49 : vector<1x128xf32> to vector<8x128xf32>
    %51 = arith.addf %48, %50 : vector<8x128xf32>
    %cst_33 = arith.constant 5.000000e-01 : f32
    %52 = vector.broadcast %cst_33 : f32 to vector<8x128xf32>
    %53 = arith.mulf %52, %51 : vector<8x128xf32>
    %54 = math.tanh %53 : vector<8x128xf32>
    %cst_34 = arith.constant 5.000000e-01 : f32
    %55 = vector.broadcast %cst_34 : f32 to vector<8x128xf32>
    %56 = arith.mulf %55, %54 : vector<8x128xf32>
    %cst_35 = arith.constant 5.000000e-01 : f32
    %57 = vector.broadcast %cst_35 : f32 to vector<8x128xf32>
    %58 = arith.addf %56, %57 : vector<8x128xf32>
    %59 = vector.extract_strided_slice %58 {offsets = [0, 0], sizes = [8, 32], strides = [1, 1]} : vector<8x128xf32> to vector<8x32xf32>
    %60 = vector.extract_strided_slice %58 {offsets = [0, 64], sizes = [8, 32], strides = [1, 1]} : vector<8x128xf32> to vector<8x32xf32>
    %61 = arith.addf %59, %60 : vector<8x32xf32>
    %62 = arith.mulf %61, %14 : vector<8x32xf32>
    %63 = vector.extract_strided_slice %58 {offsets = [0, 32], sizes = [8, 32], strides = [1, 1]} : vector<8x128xf32> to vector<8x32xf32>
    %64 = arith.mulf %63, %39 : vector<8x32xf32>
    %65 = vector.extract_strided_slice %58 {offsets = [0, 96], sizes = [8, 32], strides = [1, 1]} : vector<8x128xf32> to vector<8x32xf32>
    %66 = arith.mulf %65, %40 : vector<8x32xf32>
    %67 = arith.addf %64, %66 : vector<8x32xf32>
    %c0_36 = arith.constant 0 : index
    %c0_37 = arith.constant 0 : index
    %68 = vector.load %arg15[%c0_36, %c0_37] : memref<32x96xf32, #tpu.memory_space<vmem>>, vector<32x96xf32>
    %c0_38 = arith.constant 0 : index
    %c0_39 = arith.constant 0 : index
    %69 = vector.load %arg16[%c0_38, %c0_39] : memref<32x96xf32, #tpu.memory_space<vmem>>, vector<32x96xf32>
    %c0_40 = arith.constant 0 : index
    %c0_41 = arith.constant 0 : index
    %70 = vector.load %arg17[%c0_40, %c0_41] : memref<1x96xf32, #tpu.memory_space<vmem>>, vector<1x96xf32>
    %c0_42 = arith.constant 0 : index
    %c0_43 = arith.constant 0 : index
    %71 = vector.load %arg18[%c0_42, %c0_43] : memref<1x96xf32, #tpu.memory_space<vmem>>, vector<1x96xf32>
    %cst_44 = arith.constant dense<0.000000e+00> : vector<8x96xf32>
    %72 = tpu.matmul %67, %68, %cst_44 {dimension_numbers = #tpu.dot_dimension_numbers<[1], [0], [0], [1], [0, 0, 1, 1], [], []>} : vector<8x32xf32>, vector<32x96xf32>, vector<8x96xf32> -> vector<8x96xf32>
    %73 = vector.broadcast %70 : vector<1x96xf32> to vector<8x96xf32>
    %74 = arith.addf %72, %73 : vector<8x96xf32>
    %cst_45 = arith.constant dense<0.000000e+00> : vector<8x96xf32>
    %75 = tpu.matmul %14, %69, %cst_45 {dimension_numbers = #tpu.dot_dimension_numbers<[1], [0], [0], [1], [0, 0, 1, 1], [], []>} : vector<8x32xf32>, vector<32x96xf32>, vector<8x96xf32> -> vector<8x96xf32>
    %76 = vector.broadcast %71 : vector<1x96xf32> to vector<8x96xf32>
    %77 = arith.addf %75, %76 : vector<8x96xf32>
    %78 = vector.extract_strided_slice %74 {offsets = [0, 0], sizes = [8, 32], strides = [1, 1]} : vector<8x96xf32> to vector<8x32xf32>
    %79 = vector.extract_strided_slice %77 {offsets = [0, 0], sizes = [8, 32], strides = [1, 1]} : vector<8x96xf32> to vector<8x32xf32>
    %80 = arith.addf %78, %79 : vector<8x32xf32>
    %cst_46 = arith.constant 5.000000e-01 : f32
    %81 = vector.broadcast %cst_46 : f32 to vector<8x32xf32>
    %82 = arith.mulf %81, %80 : vector<8x32xf32>
    %83 = math.tanh %82 : vector<8x32xf32>
    %cst_47 = arith.constant 5.000000e-01 : f32
    %84 = vector.broadcast %cst_47 : f32 to vector<8x32xf32>
    %85 = arith.mulf %84, %83 : vector<8x32xf32>
    %cst_48 = arith.constant 5.000000e-01 : f32
    %86 = vector.broadcast %cst_48 : f32 to vector<8x32xf32>
    %87 = arith.addf %85, %86 : vector<8x32xf32>
    %88 = vector.extract_strided_slice %74 {offsets = [0, 32], sizes = [8, 32], strides = [1, 1]} : vector<8x96xf32> to vector<8x32xf32>
    %89 = vector.extract_strided_slice %77 {offsets = [0, 32], sizes = [8, 32], strides = [1, 1]} : vector<8x96xf32> to vector<8x32xf32>
    %90 = arith.addf %88, %89 : vector<8x32xf32>
    %cst_49 = arith.constant 5.000000e-01 : f32
    %91 = vector.broadcast %cst_49 : f32 to vector<8x32xf32>
    %92 = arith.mulf %91, %90 : vector<8x32xf32>
    %93 = math.tanh %92 : vector<8x32xf32>
    %cst_50 = arith.constant 5.000000e-01 : f32
    %94 = vector.broadcast %cst_50 : f32 to vector<8x32xf32>
    %95 = arith.mulf %94, %93 : vector<8x32xf32>
    %cst_51 = arith.constant 5.000000e-01 : f32
    %96 = vector.broadcast %cst_51 : f32 to vector<8x32xf32>
    %97 = arith.addf %95, %96 : vector<8x32xf32>
    %98 = vector.extract_strided_slice %74 {offsets = [0, 64], sizes = [8, 32], strides = [1, 1]} : vector<8x96xf32> to vector<8x32xf32>
    %99 = vector.extract_strided_slice %77 {offsets = [0, 64], sizes = [8, 32], strides = [1, 1]} : vector<8x96xf32> to vector<8x32xf32>
    %100 = arith.mulf %87, %99 : vector<8x32xf32>
    %101 = arith.addf %98, %100 : vector<8x32xf32>
    %102 = math.tanh %101 : vector<8x32xf32>
    %cst_52 = arith.constant 1.000000e+00 : f32
    %103 = vector.broadcast %cst_52 : f32 to vector<8x32xf32>
    %104 = arith.subf %103, %97 : vector<8x32xf32>
    %105 = arith.mulf %104, %102 : vector<8x32xf32>
    %106 = arith.mulf %97, %14 : vector<8x32xf32>
    %107 = arith.addf %105, %106 : vector<8x32xf32>
    %108 = arith.index_cast %arg1 : i32 to index
    %c0_53 = arith.constant 0 : index
    %c0_54 = arith.constant 0 : index
    %109 = vector.load %arg20[%108, %c0_53, %c0_54] : memref<2x8x32xf32, #tpu.memory_space<vmem>>, vector<1x8x32xf32>
    %110 = vector.shape_cast %109 : vector<1x8x32xf32> to vector<8x32xf32>
    %111 = vector.shape_cast %107 : vector<8x32xf32> to vector<1x8x32xf32>
    tpu.vector_store %arg20[%108, %c0_53, %c0_54], %111 {strides = array<i32>} : memref<2x8x32xf32, #tpu.memory_space<vmem>>, vector<1x8x32xf32>,
    %c0_55 = arith.constant 0 : index
    %c0_56 = arith.constant 0 : index
    %112 = vector.load %arg21[%c0_55, %c0_56] : memref<8x32xf32, #tpu.memory_space<vmem>>, vector<8x32xf32>
    %cst_57 = arith.constant dense<0.000000e+00> : vector<8x32xf32>
    %113 = tpu.matmul %38, %62, %cst_57 {dimension_numbers = #tpu.dot_dimension_numbers<[1], [0], [0], [1], [0, 0, 1, 1], [], []>} : vector<8x8xf32>, vector<8x32xf32>, vector<8x32xf32> -> vector<8x32xf32>
    %114 = arith.addf %112, %113 : vector<8x32xf32>
    %c0_58 = arith.constant 0 : index
    %c0_59 = arith.constant 0 : index
    %115 = vector.load %arg21[%c0_58, %c0_59] : memref<8x32xf32, #tpu.memory_space<vmem>>, vector<8x32xf32>
    tpu.vector_store %arg21[%c0_58, %c0_59], %114 {strides = array<i32>} : memref<8x32xf32, #tpu.memory_space<vmem>>, vector<8x32xf32>,
    %c0_i32_60 = arith.constant 0 : i32
    %116 = arith.cmpi eq, %arg0, %c0_i32_60 : i32
    %117 = arith.extui %116 : i1 to i32
    %c0_i32_61 = arith.constant 0 : i32
    %118 = arith.cmpi ne, %117, %c0_i32_61 : i32
    scf.if %118 {
      %c0_66 = arith.constant 0 : index
      %c0_67 = arith.constant 0 : index
      %127 = vector.load %arg22[%c0_66, %c0_67] : memref<8x1xf32, #tpu.memory_space<vmem>>, vector<8x1xf32>
      %cst_68 = arith.constant dense<0.000000e+00> : vector<8xf32>
      %128 = vector.multi_reduction <add>, %38, %cst_68 [1] : vector<8x8xf32> to vector<8xf32>
      %129 = vector.shape_cast %128 : vector<8xf32> to vector<8x1xf32>
      %130 = arith.addf %127, %129 : vector<8x1xf32>
      %c0_69 = arith.constant 0 : index
      %c0_70 = arith.constant 0 : index
      %131 = vector.load %arg22[%c0_69, %c0_70] : memref<8x1xf32, #tpu.memory_space<vmem>>, vector<8x1xf32>
      tpu.vector_store %arg22[%c0_69, %c0_70], %130 {strides = array<i32>} : memref<8x1xf32, #tpu.memory_space<vmem>>, vector<8x1xf32>,
    } else {
    }
    %c0_i32_62 = arith.constant 0 : i32
    %119 = arith.cmpi eq, %arg0, %c0_i32_62 : i32
    %c1_i32 = arith.constant 1 : i32
    %120 = arith.cmpi eq, %arg1, %c1_i32 : i32
    %121 = arith.andi %119, %120 : i1
    %122 = arith.extui %121 : i1 to i32
    %c0_i32_63 = arith.constant 0 : i32
    %123 = arith.cmpi ne, %122, %c0_i32_63 : i32
    scf.if %123 {
      %c0_66 = arith.constant 0 : index
      %c0_67 = arith.constant 0 : index
      %127 = vector.load %arg22[%c0_66, %c0_67] : memref<8x1xf32, #tpu.memory_space<vmem>>, vector<8x1xf32>
      %cst_68 = arith.constant 1.000000e+00 : f32
      %128 = vector.broadcast %cst_68 : f32 to vector<8x1xf32>
      %129 = arith.maximumf %127, %128 : vector<8x1xf32>
      %cst_69 = arith.constant 1.000000e+00 : f32
      %130 = vector.broadcast %cst_69 : f32 to vector<8x1xf32>
      %131 = arith.divf %130, %129 : vector<8x1xf32>
      %c0_70 = arith.constant 0 : index
      %c0_71 = arith.constant 0 : index
      %132 = vector.load %arg22[%c0_70, %c0_71] : memref<8x1xf32, #tpu.memory_space<vmem>>, vector<8x1xf32>
      tpu.vector_store %arg22[%c0_70, %c0_71], %131 {strides = array<i32>} : memref<8x1xf32, #tpu.memory_space<vmem>>, vector<8x1xf32>,
    } else {
    }
    %c1_i32_64 = arith.constant 1 : i32
    %124 = arith.cmpi eq, %arg1, %c1_i32_64 : i32
    %125 = arith.extui %124 : i1 to i32
    %c0_i32_65 = arith.constant 0 : i32
    %126 = arith.cmpi ne, %125, %c0_i32_65 : i32
    scf.if %126 {
      %c0_66 = arith.constant 0 : index
      %c0_67 = arith.constant 0 : index
      %127 = vector.load %arg21[%c0_66, %c0_67] : memref<8x32xf32, #tpu.memory_space<vmem>>, vector<8x32xf32>
      %c0_68 = arith.constant 0 : index
      %c0_69 = arith.constant 0 : index
      %128 = vector.load %arg22[%c0_68, %c0_69] : memref<8x1xf32, #tpu.memory_space<vmem>>, vector<8x1xf32>
      %129 = vector.broadcast %128 : vector<8x1xf32> to vector<8x32xf32>
      %130 = arith.mulf %127, %129 : vector<8x32xf32>
      %c0_70 = arith.constant 0 : index
      %c0_71 = arith.constant 0 : index
      %131 = vector.load %arg11[%c0_70, %c0_71] : memref<32x96xf32, #tpu.memory_space<vmem>>, vector<32x96xf32>
      %c0_72 = arith.constant 0 : index
      %c0_73 = arith.constant 0 : index
      %132 = vector.load %arg12[%c0_72, %c0_73] : memref<32x96xf32, #tpu.memory_space<vmem>>, vector<32x96xf32>
      %c0_74 = arith.constant 0 : index
      %c0_75 = arith.constant 0 : index
      %133 = vector.load %arg13[%c0_74, %c0_75] : memref<1x96xf32, #tpu.memory_space<vmem>>, vector<1x96xf32>
      %c0_76 = arith.constant 0 : index
      %c0_77 = arith.constant 0 : index
      %134 = vector.load %arg14[%c0_76, %c0_77] : memref<1x96xf32, #tpu.memory_space<vmem>>, vector<1x96xf32>
      %cst_78 = arith.constant dense<0.000000e+00> : vector<8x96xf32>
      %135 = tpu.matmul %130, %131, %cst_78 {dimension_numbers = #tpu.dot_dimension_numbers<[1], [0], [0], [1], [0, 0, 1, 1], [], []>} : vector<8x32xf32>, vector<32x96xf32>, vector<8x96xf32> -> vector<8x96xf32>
      %136 = vector.broadcast %133 : vector<1x96xf32> to vector<8x96xf32>
      %137 = arith.addf %135, %136 : vector<8x96xf32>
      %cst_79 = arith.constant dense<0.000000e+00> : vector<8x96xf32>
      %138 = tpu.matmul %11, %132, %cst_79 {dimension_numbers = #tpu.dot_dimension_numbers<[1], [0], [0], [1], [0, 0, 1, 1], [], []>} : vector<8x32xf32>, vector<32x96xf32>, vector<8x96xf32> -> vector<8x96xf32>
      %139 = vector.broadcast %134 : vector<1x96xf32> to vector<8x96xf32>
      %140 = arith.addf %138, %139 : vector<8x96xf32>
      %141 = vector.extract_strided_slice %137 {offsets = [0, 0], sizes = [8, 32], strides = [1, 1]} : vector<8x96xf32> to vector<8x32xf32>
      %142 = vector.extract_strided_slice %140 {offsets = [0, 0], sizes = [8, 32], strides = [1, 1]} : vector<8x96xf32> to vector<8x32xf32>
      %143 = arith.addf %141, %142 : vector<8x32xf32>
      %cst_80 = arith.constant 5.000000e-01 : f32
      %144 = vector.broadcast %cst_80 : f32 to vector<8x32xf32>
      %145 = arith.mulf %144, %143 : vector<8x32xf32>
      %146 = math.tanh %145 : vector<8x32xf32>
      %cst_81 = arith.constant 5.000000e-01 : f32
      %147 = vector.broadcast %cst_81 : f32 to vector<8x32xf32>
      %148 = arith.mulf %147, %146 : vector<8x32xf32>
      %cst_82 = arith.constant 5.000000e-01 : f32
      %149 = vector.broadcast %cst_82 : f32 to vector<8x32xf32>
      %150 = arith.addf %148, %149 : vector<8x32xf32>
      %151 = vector.extract_strided_slice %137 {offsets = [0, 32], sizes = [8, 32], strides = [1, 1]} : vector<8x96xf32> to vector<8x32xf32>
      %152 = vector.extract_strided_slice %140 {offsets = [0, 32], sizes = [8, 32], strides = [1, 1]} : vector<8x96xf32> to vector<8x32xf32>
      %153 = arith.addf %151, %152 : vector<8x32xf32>
      %cst_83 = arith.constant 5.000000e-01 : f32
      %154 = vector.broadcast %cst_83 : f32 to vector<8x32xf32>
      %155 = arith.mulf %154, %153 : vector<8x32xf32>
      %156 = math.tanh %155 : vector<8x32xf32>
      %cst_84 = arith.constant 5.000000e-01 : f32
      %157 = vector.broadcast %cst_84 : f32 to vector<8x32xf32>
      %158 = arith.mulf %157, %156 : vector<8x32xf32>
      %cst_85 = arith.constant 5.000000e-01 : f32
      %159 = vector.broadcast %cst_85 : f32 to vector<8x32xf32>
      %160 = arith.addf %158, %159 : vector<8x32xf32>
      %161 = vector.extract_strided_slice %137 {offsets = [0, 64], sizes = [8, 32], strides = [1, 1]} : vector<8x96xf32> to vector<8x32xf32>
      %162 = vector.extract_strided_slice %140 {offsets = [0, 64], sizes = [8, 32], strides = [1, 1]} : vector<8x96xf32> to vector<8x32xf32>
      %163 = arith.mulf %150, %162 : vector<8x32xf32>
      %164 = arith.addf %161, %163 : vector<8x32xf32>
      %165 = math.tanh %164 : vector<8x32xf32>
      %cst_86 = arith.constant 1.000000e+00 : f32
      %166 = vector.broadcast %cst_86 : f32 to vector<8x32xf32>
      %167 = arith.subf %166, %160 : vector<8x32xf32>
      %168 = arith.mulf %167, %165 : vector<8x32xf32>
      %169 = arith.mulf %160, %11 : vector<8x32xf32>
      %170 = arith.addf %168, %169 : vector<8x32xf32>
      %c0_87 = arith.constant 0 : index
      %c0_88 = arith.constant 0 : index
      %171 = vector.load %arg19[%c0_87, %c0_88] : memref<8x32xf32, #tpu.memory_space<vmem>>, vector<8x32xf32>
      tpu.vector_store %arg19[%c0_87, %c0_88], %170 {strides = array<i32>} : memref<8x32xf32, #tpu.memory_space<vmem>>, vector<8x32xf32>,
    } else {
    }
    return
  }
  func.func @transform_0(%arg0: i32, %arg1: i32) -> (i32, i32) {
    %c0_i32 = arith.constant 0 : i32
    %c0_i32_0 = arith.constant 0 : i32
    %c0_i32_1 = arith.constant 0 : i32
    return %c0_i32, %c0_i32_0 : i32, i32
  }
  func.func @transform_1(%arg0: i32, %arg1: i32) -> (i32, i32, i32) {
    %c0_i32 = arith.constant 0 : i32
    %c0_i32_0 = arith.constant 0 : i32
    %c0_i32_1 = arith.constant 0 : i32
    %c0_i32_2 = arith.constant 0 : i32
    return %c0_i32, %c0_i32_0, %c0_i32_1 : i32, i32, i32
  }
  func.func @transform_2(%arg0: i32, %arg1: i32) -> (i32, i32, i32) {
    %c0_i32 = arith.constant 0 : i32
    %c0_i32_0 = arith.constant 0 : i32
    %c0_i32_1 = arith.constant 0 : i32
    %c0_i32_2 = arith.constant 0 : i32
    return %c0_i32, %c0_i32_0, %c0_i32_1 : i32, i32, i32
  }
  func.func @transform_3(%arg0: i32, %arg1: i32) -> (i32, i32, i32) {
    %c0_i32 = arith.constant 0 : i32
    %c0_i32_0 = arith.constant 0 : i32
    %c0_i32_1 = arith.constant 0 : i32
    %c0_i32_2 = arith.constant 0 : i32
    return %c0_i32, %c0_i32_0, %c0_i32_1 : i32, i32, i32
  }
  func.func @transform_4(%arg0: i32, %arg1: i32) -> (i32, i32, i32) {
    %c0_i32 = arith.constant 0 : i32
    %c0_i32_0 = arith.constant 0 : i32
    %c0_i32_1 = arith.constant 0 : i32
    %c0_i32_2 = arith.constant 0 : i32
    return %c0_i32, %c0_i32_0, %c0_i32_1 : i32, i32, i32
  }
  func.func @transform_5(%arg0: i32, %arg1: i32) -> (i32, i32) {
    %c0_i32 = arith.constant 0 : i32
    %c0_i32_0 = arith.constant 0 : i32
    %c0_i32_1 = arith.constant 0 : i32
    return %c0_i32, %c0_i32_0 : i32, i32
  }
  func.func @transform_6(%arg0: i32, %arg1: i32) -> (i32, i32) {
    %c0_i32 = arith.constant 0 : i32
    %c0_i32_0 = arith.constant 0 : i32
    %c0_i32_1 = arith.constant 0 : i32
    return %c0_i32, %c0_i32_0 : i32, i32
  }
  func.func @transform_7(%arg0: i32, %arg1: i32) -> (i32, i32) {
    %c0_i32 = arith.constant 0 : i32
    %c0_i32_0 = arith.constant 0 : i32
    %c0_i32_1 = arith.constant 0 : i32
    return %c0_i32, %c0_i32_0 : i32, i32
  }
  func.func @transform_8(%arg0: i32, %arg1: i32) -> (i32, i32) {
    %c0_i32 = arith.constant 0 : i32
    %c0_i32_0 = arith.constant 0 : i32
    %c0_i32_1 = arith.constant 0 : i32
    return %c0_i32, %c0_i32_0 : i32, i32
  }
  func.func @transform_9(%arg0: i32, %arg1: i32) -> (i32, i32) {
    %c0_i32 = arith.constant 0 : i32
    %c0_i32_0 = arith.constant 0 : i32
    %c0_i32_1 = arith.constant 0 : i32
    return %c0_i32, %c0_i32_0 : i32, i32
  }
  func.func @transform_10(%arg0: i32, %arg1: i32) -> (i32, i32) {
    %c0_i32 = arith.constant 0 : i32
    %c0_i32_0 = arith.constant 0 : i32
    %c0_i32_1 = arith.constant 0 : i32
    return %c0_i32, %c0_i32_0 : i32, i32
  }
  func.func @transform_11(%arg0: i32, %arg1: i32) -> (i32, i32) {
    %c0_i32 = arith.constant 0 : i32
    %c0_i32_0 = arith.constant 0 : i32
    %c0_i32_1 = arith.constant 0 : i32
    return %c0_i32, %c0_i32_0 : i32, i32
  }
  func.func @transform_12(%arg0: i32, %arg1: i32) -> (i32, i32) {
    %c0_i32 = arith.constant 0 : i32
    %c0_i32_0 = arith.constant 0 : i32
    %c0_i32_1 = arith.constant 0 : i32
    return %c0_i32, %c0_i32_0 : i32, i32
  }
  func.func @transform_13(%arg0: i32, %arg1: i32) -> (i32, i32) {
    %c0_i32 = arith.constant 0 : i32
    %c0_i32_0 = arith.constant 0 : i32
    %c0_i32_1 = arith.constant 0 : i32
    return %c0_i32, %c0_i32_0 : i32, i32
  }
  func.func @transform_14(%arg0: i32, %arg1: i32) -> (i32, i32) {
    %c0_i32 = arith.constant 0 : i32
    %c0_i32_0 = arith.constant 0 : i32
    %c0_i32_1 = arith.constant 0 : i32
    return %c0_i32, %c0_i32_0 : i32, i32
  }
  func.func @transform_15(%arg0: i32, %arg1: i32) -> (i32, i32) {
    %c0_i32 = arith.constant 0 : i32
    %c0_i32_0 = arith.constant 0 : i32
    %c0_i32_1 = arith.constant 0 : i32
    return %c0_i32, %c0_i32_0 : i32, i32
  }
  func.func @transform_16(%arg0: i32, %arg1: i32) -> (i32, i32) {
    %c0_i32 = arith.constant 0 : i32
    %c0_i32_0 = arith.constant 0 : i32
    %c0_i32_1 = arith.constant 0 : i32
    return %c0_i32, %c0_i32_0 : i32, i32
  }
  func.func @transform_17(%arg0: i32, %arg1: i32) -> (i32, i32) {
    %c0_i32 = arith.constant 0 : i32
    %c0_i32_0 = arith.constant 0 : i32
    %c0_i32_1 = arith.constant 0 : i32
    return %c0_i32, %c0_i32_0 : i32, i32
  }
  func.func @transform_18(%arg0: i32, %arg1: i32) -> (i32, i32, i32) {
    %c0_i32 = arith.constant 0 : i32
    %c0_i32_0 = arith.constant 0 : i32
    %c0_i32_1 = arith.constant 0 : i32
    %c0_i32_2 = arith.constant 0 : i32
    return %c0_i32, %c0_i32_0, %c0_i32_1 : i32, i32, i32
  }
}

</mosaic_0001>

<llo_original>
// kernel: squeeze.5
$region0: #{squeeze.5}
  %s0 = inlined_call_operand.vmem [shape: s32[16], index: 0, kind: input, shape index: {}]
  %s1 = inlined_call_operand.vmem [shape: s32[2,1,8], index: 1, kind: output, shape index: {}]
  $region1: #{squeeze.5} parent=0
    #allocation0 [shape = 'u8[4096]{0}', space=vmem, size = 0x1000, scoped, tag = 'scoped mem for output reshape']
    #allocation1 [shape = 'u8[4096]{0}', space=vmem, size = 0x1000, scoped, tag = 'scoped mem for input reshape']
    %s3 = ssub.s32 2, 1
    %v4 = vld [vmem:[%s0] sm:%s3]
    %5 = vst [vmem:[#allocation1] sm:%s3] %v4
    %v6 = vld [vmem:[#allocation1] sm:$0x1]
    %vm7 = vcmask 64512
    %8 = vst.msk [vmem:[#allocation0] sm:$0x1] %vm7, %v6
    %v9 = vld [vmem:[#allocation1] sm:$0x1]
    %10 = vrot.lane.b32.xlu0 %v9, 120
    %v11 = vpop.permute.xlu0 %10
    %vm12 = vcmask 64512
    %s13 = scalar_lea.vmem [#allocation0], 1
    %14 = vst.msk [vmem:[%s13] sm:$0x1] %vm12, %v11
    %s16 = ssub.s32 4, 1
    %v17 = vld [vmem:[#allocation0] sm:%s16]
    %s19 = ssub.s32 4, 1
    %20 = vst [vmem:[%s1] sm:%s19] %v17

// kernel: squeeze.1
$region0: #{squeeze.1}
  %s0 = inlined_call_operand.vmem [shape: s32[16], index: 0, kind: input, shape index: {}]
  %s1 = inlined_call_operand.vmem [shape: s32[2,8,1], index: 1, kind: output, shape index: {}]
  $region1: #{squeeze.1} parent=0
    #allocation0 [shape = 'u8[4096]{0}', space=vmem, size = 0x1000, scoped, tag = 'scoped mem for input reshape']
    %s3 = ssub.s32 2, 1
    %v4 = vld [vmem:[%s0] sm:%s3]
    %5 = vst [vmem:[#allocation0] sm:%s3] %v4
    %v6 = vld [vmem:[#allocation0] sm:$0x1]
    %vm7 = vcmask 7168
    %8 = vst.msk [vmem:[%s1] sm:$0x1] %vm7, %v6
    %v9 = vld [vmem:[#allocation0] sm:$0x1]
    %10 = vrot.lane.b32.xlu0 %v9, 127
    %v11 = vpop.permute.xlu0 %10
    %vm12 = vcmask 7168
    %s13 = scalar_lea.vmem %s1, 1
    %14 = vst.msk [vmem:[%s13] sm:$0x1] %vm12, %v11
    %v15 = vld [vmem:[#allocation0] sm:$0x1]
    %16 = vrot.lane.b32.xlu0 %v15, 126
    %v17 = vpop.permute.xlu0 %16
    %vm18 = vcmask 7168
    %s19 = scalar_lea.vmem %s1, 2
    %20 = vst.msk [vmem:[%s19] sm:$0x1] %vm18, %v17
    %v21 = vld [vmem:[#allocation0] sm:$0x1]
    %22 = vrot.lane.b32.xlu0 %v21, 125
    %v23 = vpop.permute.xlu0 %22
    %vm24 = vcmask 7168
    %s25 = scalar_lea.vmem %s1, 3
    %26 = vst.msk [vmem:[%s25] sm:$0x1] %vm24, %v23
    %v27 = vld [vmem:[#allocation0] sm:$0x1]
    %28 = vrot.lane.b32.xlu0 %v27, 124
    %v29 = vpop.permute.xlu0 %28
    %vm30 = vcmask 7168
    %s31 = scalar_lea.vmem %s1, 4
    %32 = vst.msk [vmem:[%s31] sm:$0x1] %vm30, %v29
    %v33 = vld [vmem:[#allocation0] sm:$0x1]
    %34 = vrot.lane.b32.xlu0 %v33, 123
    %v35 = vpop.permute.xlu0 %34
    %vm36 = vcmask 7168
    %s37 = scalar_lea.vmem %s1, 5
    %38 = vst.msk [vmem:[%s37] sm:$0x1] %vm36, %v35
    %v39 = vld [vmem:[#allocation0] sm:$0x1]
    %40 = vrot.lane.b32.xlu0 %v39, 122
    %v41 = vpop.permute.xlu0 %40
    %vm42 = vcmask 7168
    %s43 = scalar_lea.vmem %s1, 6
    %44 = vst.msk [vmem:[%s43] sm:$0x1] %vm42, %v41
    %v45 = vld [vmem:[#allocation0] sm:$0x1]
    %46 = vrot.lane.b32.xlu0 %v45, 121
    %v47 = vpop.permute.xlu0 %46
    %vm48 = vcmask 7168
    %s49 = scalar_lea.vmem %s1, 7
    %50 = vst.msk [vmem:[%s49] sm:$0x1] %vm48, %v47
    %v51 = vld [vmem:[#allocation0] sm:$0x1]
    %52 = vrot.lane.b32.xlu0 %v51, 120
    %v53 = vpop.permute.xlu0 %52
    %vm54 = vcmask 7168
    %s55 = scalar_lea.vmem %s1, 8
    %56 = vst.msk [vmem:[%s55] sm:$0x1] %vm54, %v53
    %v57 = vld [vmem:[#allocation0] sm:$0x1]
    %58 = vrot.lane.b32.xlu0 %v57, 119
    %v59 = vpop.permute.xlu0 %58
    %vm60 = vcmask 7168
    %s61 = scalar_lea.vmem %s1, 9
    %62 = vst.msk [vmem:[%s61] sm:$0x1] %vm60, %v59
    %v63 = vld [vmem:[#allocation0] sm:$0x1]
    %64 = vrot.lane.b32.xlu0 %v63, 118
    %v65 = vpop.permute.xlu0 %64
    %vm66 = vcmask 7168
    %s67 = scalar_lea.vmem %s1, 10
    %68 = vst.msk [vmem:[%s67] sm:$0x1] %vm66, %v65
    %v69 = vld [vmem:[#allocation0] sm:$0x1]
    %70 = vrot.lane.b32.xlu0 %v69, 117
    %v71 = vpop.permute.xlu0 %70
    %vm72 = vcmask 7168
    %s73 = scalar_lea.vmem %s1, 11
    %74 = vst.msk [vmem:[%s73] sm:$0x1] %vm72, %v71
    %v75 = vld [vmem:[#allocation0] sm:$0x1]
    %76 = vrot.lane.b32.xlu0 %v75, 116
    %v77 = vpop.permute.xlu0 %76
    %vm78 = vcmask 7168
    %s79 = scalar_lea.vmem %s1, 12
    %80 = vst.msk [vmem:[%s79] sm:$0x1] %vm78, %v77
    %v81 = vld [vmem:[#allocation0] sm:$0x1]
    %82 = vrot.lane.b32.xlu0 %v81, 115
    %v83 = vpop.permute.xlu0 %82
    %vm84 = vcmask 7168
    %s85 = scalar_lea.vmem %s1, 13
    %86 = vst.msk [vmem:[%s85] sm:$0x1] %vm84, %v83
    %v87 = vld [vmem:[#allocation0] sm:$0x1]
    %88 = vrot.lane.b32.xlu0 %v87, 114
    %v89 = vpop.permute.xlu0 %88
    %vm90 = vcmask 7168
    %s91 = scalar_lea.vmem %s1, 14
    %92 = vst.msk [vmem:[%s91] sm:$0x1] %vm90, %v89
    %v93 = vld [vmem:[#allocation0] sm:$0x1]
    %94 = vrot.lane.b32.xlu0 %v93, 113
    %v95 = vpop.permute.xlu0 %94
    %vm96 = vcmask 7168
    %s97 = scalar_lea.vmem %s1, 15
    %98 = vst.msk [vmem:[%s97] sm:$0x1] %vm96, %v95

// kernel: triplet_imp_pallas.1
$region0: #{triplet_imp_pallas.1}
  #allocation0 [shape = 'u32[]', space=smem, size = 0x4, offset = 0x4, fixed_abs, tag = 'smem constant byte address 0x4 - core index']
  #allocation1 [shape = 'u32[72,128]{1,0:T(1,128)}', space=vmem, size = 0x9000, scoped, tag = 'internal scratch']
  #allocation2 [shape = 'f32[8,32]{1,0:T(8,128)}', space=vmem, size = 0x1000, scoped, tag = 'scratch operand']
  #allocation3 [shape = 'f32[8,1]{1,0:T(8,128)}', space=vmem, size = 0x1000, scoped, tag = 'scratch operand']
  #allocation4 [shape = 's32[8,8]{1,0:T(8,128)}', space=vmem, size = 0x1000, scoped, tag = 'scratch operand']
  #allocation5 [shape = 's32[8,8]{1,0:T(8,128)}', space=vmem, size = 0x1000, scoped, tag = 'scratch operand']
  %s0 = inlined_call_operand.vmem [shape: f32[8,32], index: 0, kind: input, shape index: {}]
  %s1 = inlined_call_operand.hbm [shape: f32[2,8,32], index: 1, kind: input, shape index: {}]
  %s2 = inlined_call_operand.vmem [shape: s32[2,8,1], index: 2, kind: input, shape index: {}]
  %s3 = inlined_call_operand.vmem [shape: s32[2,8,1], index: 3, kind: input, shape index: {}]
  %s4 = inlined_call_operand.vmem [shape: s32[2,1,8], index: 4, kind: input, shape index: {}]
  %s5 = inlined_call_operand.vmem [shape: f32[32,128], index: 5, kind: input, shape index: {}]
  %s6 = inlined_call_operand.hbm [shape: f32[32,128], index: 6, kind: input, shape index: {}]
  %s7 = inlined_call_operand.hbm [shape: f32[32,128], index: 7, kind: input, shape index: {}]
  %s8 = inlined_call_operand.vmem [shape: f32[1,128], index: 8, kind: input, shape index: {}]
  %s9 = inlined_call_operand.hbm [shape: f32[32,96], index: 9, kind: input, shape index: {}]
  %s10 = inlined_call_operand.hbm [shape: f32[32,96], index: 10, kind: input, shape index: {}]
  %s11 = inlined_call_operand.vmem [shape: f32[1,96], index: 11, kind: input, shape index: {}]
  %s12 = inlined_call_operand.vmem [shape: f32[1,96], index: 12, kind: input, shape index: {}]
  %s13 = inlined_call_operand.hbm [shape: f32[32,96], index: 13, kind: input, shape index: {}]
  %s14 = inlined_call_operand.hbm [shape: f32[32,96], index: 14, kind: input, shape index: {}]
  %s15 = inlined_call_operand.vmem [shape: f32[1,96], index: 15, kind: input, shape index: {}]
  %s16 = inlined_call_operand.vmem [shape: f32[1,96], index: 16, kind: input, shape index: {}]
  %s17 = inlined_call_operand.hbm [shape: f32[8,32], index: 17, kind: output, shape index: {0}]
  %s18 = inlined_call_operand.hbm [shape: f32[2,8,32], index: 18, kind: output, shape index: {1}]
  %19 = xla_tuple %s17, %s18
  %s20 = sld [smem:[#allocation0]]
  $region161: #{triplet_imp_pallas.1} parent=0
    _
  %s22 = ssub.s32 1, %s20
  %s23 = scalar_select 0, %s22, %s20
  $region1: #{triplet_imp_pallas.1} parent=0
    #allocation6 [shape = 'u8[8192]{0}', space=vmem, size = 0x2000, scoped, tag = 'input window, operand 1, single buffered']
    #allocation7 [shape = 's32[2]{0}', space=sflag, size = 0x8, scoped, tag = 'scoped memory for triplet_imp_pallas.1']
    #allocation8 [shape = 's32[2]{0}', space=sflag, size = 0x8, scoped, tag = 'scoped memory for triplet_imp_pallas.1']
    #allocation9 [shape = 'u8[16384]{0}', space=vmem, size = 0x4000, scoped, tag = 'input window, operand 6, single buffered']
    #allocation10 [shape = 's32[1]{0}', space=sflag, size = 0x4, scoped, tag = 'scoped memory for triplet_imp_pallas.1']
    #allocation11 [shape = 'u8[16384]{0}', space=vmem, size = 0x4000, scoped, tag = 'input window, operand 7, single buffered']
    #allocation12 [shape = 'u8[16384]{0}', space=vmem, size = 0x4000, scoped, tag = 'input window, operand 9, single buffered']
    #allocation13 [shape = 's32[1]{0}', space=sflag, size = 0x4, scoped, tag = 'scoped memory for triplet_imp_pallas.1']
    #allocation14 [shape = 'u8[16384]{0}', space=vmem, size = 0x4000, scoped, tag = 'input window, operand 10, single buffered']
    #allocation15 [shape = 'u8[16384]{0}', space=vmem, size = 0x4000, scoped, tag = 'input window, operand 13, single buffered']
    #allocation16 [shape = 's32[1]{0}', space=sflag, size = 0x4, scoped, tag = 'scoped memory for triplet_imp_pallas.1']
    #allocation17 [shape = 'u8[16384]{0}', space=vmem, size = 0x4000, scoped, tag = 'input window, operand 14, single buffered']
    #allocation18 [shape = 'u8[4096]{0}', space=vmem, size = 0x1000, scoped, tag = 'output window, operand 0, single buffered']
    #allocation19 [shape = 'u8[8192]{0}', space=vmem, size = 0x2000, scoped, tag = 'output window, operand 1, single buffered']
    #allocation20 [shape = 's32[1]{0}', space=sflag, size = 0x4, scoped, tag = 'scoped memory for triplet_imp_pallas.1']
    %24 = vsyncpa [#allocation7], 0
    %25 = vsyncpa [#allocation10], 0
    %26 = vsyncpa [#allocation13], 0
    %27 = vsyncpa [#allocation16], 0
    %28 = vsyncpa [#allocation8], 0
    %29 = vsyncpa [#allocation20], 0
    loop: start=0, step=1, limit=6
    $region2: #{triplet_imp_pallas.1} parent=1 // loop_pre_header
      _
    $region3: #{triplet_imp_pallas.1} parent=1 // loop_header
      %s31 = sphi 0, %s35
      %p32 = scmp.ge.s32.totalorder %s31, 6
      %s38 = sphi 0, %s50
      %s39 = sphi 0, %s46
      %s40 = sphi 0, %s38
      %s41 = sphi 0, %s39
      %s42 = sphi 0, %s40
      %s43 = sphi 0, %s41
      %s51 = sphi 0, %s51
      %s53 = sphi 0, %s51
      %s54 = sphi 0, %s53
      %s68 = sphi 0, %s54
      %s72 = sphi 0, %s72
      %s74 = sphi 0, %s72
      %s75 = sphi 0, %s74
      %s89 = sphi 0, %s75
      %s93 = sphi 0, %s93
      %s95 = sphi 0, %s93
      %s96 = sphi 0, %s95
      %s110 = sphi 0, %s96
      %s114 = sphi 0, %s114
      %s116 = sphi 0, %s114
      %s117 = sphi 0, %s116
      %s131 = sphi 0, %s117
      %s135 = sphi 0, %s135
      %s137 = sphi 0, %s135
      %s138 = sphi 0, %s137
      %s152 = sphi 0, %s138
      %s156 = sphi 0, %s156
      %s158 = sphi 0, %s156
      %s159 = sphi 0, %s158
      %s173 = sphi 0, %s159
      %s177 = sphi 0, %s177
      %s179 = sphi 0, %s177
      %s180 = sphi 0, %s179
      %s194 = sphi 0, %s180
      %s198 = sphi 0, %s198
      %s200 = sphi 0, %s198
      %s201 = sphi 0, %s200
      %s215 = sphi 0, %s201
      %s219 = sphi 0, %s219
      %s221 = sphi 0, %s219
      %s222 = sphi 0, %s221
      %s236 = sphi 0, %s222
      %s240 = sphi 0, %s240
      %s242 = sphi 0, %s240
      %s243 = sphi 0, %s242
      %s257 = sphi 0, %s243
      %s261 = sphi 0, %s261
      %s263 = sphi 0, %s261
      %s264 = sphi 0, %s263
      %s278 = sphi 0, %s264
      %s282 = sphi 0, %s282
      %s284 = sphi 0, %s282
      %s285 = sphi 0, %s284
      %s299 = sphi 0, %s285
      %s303 = sphi 0, %s303
      %s305 = sphi 0, %s303
      %s306 = sphi 0, %s305
      %s320 = sphi 0, %s306
      %s324 = sphi 0, %s324
      %s326 = sphi 0, %s324
      %s327 = sphi 0, %s326
      %s341 = sphi 0, %s327
      %s345 = sphi 0, %s345
      %s347 = sphi 0, %s345
      %s348 = sphi 0, %s347
      %s362 = sphi 0, %s348
      %s366 = sphi 0, %s366
      %s368 = sphi 0, %s366
      %s369 = sphi 0, %s368
      %s383 = sphi 0, %s369
      %s387 = sphi 0, %s387
      %s389 = sphi 0, %s387
      %s390 = sphi 0, %s389
      %s404 = sphi 0, %s390
      %s408 = sphi 0, %s408
      %s410 = sphi 0, %s408
      %s411 = sphi 0, %s410
      %s425 = sphi 0, %s411
      %s429 = sphi 0, %s429
      %s431 = sphi 0, %s429
      %s432 = sphi 0, %s431
      %s446 = sphi 0, %s432
    $region4: #{triplet_imp_pallas.1} parent=1 // loop_header_branch
      %34 = sbr.rel (%p32) target = $region8
    $region5: #{triplet_imp_pallas.1} parent=1 // loop_body
      %s36 = ssub.s32 %s31, 1
      %s37 = ssub.s32 %s31, 2
      %s44 = sadd.s32 1, %s39
      %p45 = scmp.ge.s32.totalorder %s44, 2
      %s46 = scalar_select %p45, 0, %s44
      %s47 = sadd.s32 1, %s38
      %s48 = scalar_select %p45, %s47, %s38
      %p49 = scmp.ge.s32.totalorder %s48, 2
      %s50 = scalar_select %p49, 0, %s48
      %s52 = sadd.s32 %s51, 1
      %p55 = scmp.eq.s32.totalorder %s31, 3
      %p56 = scmp.ne.s32.totalorder %s51, %s53
      %p57 = scmp.eq.s32.totalorder %s31, 0
      %p58 = por %p56, %p57
      %p59 = scmp.ne.s32.totalorder %s51, %s53
      %p60 = scmp.eq.s32.totalorder %s36, 3
      %p61 = por %p59, %p60
      %p62 = scmp.ne.s32.totalorder %s53, %s54
      %p63 = scmp.eq.s32.totalorder %s36, 0
      %p64 = por %p62, %p63
      %p65 = scmp.ne.s32.totalorder %s53, %s54
      %p66 = scmp.eq.s32.totalorder %s37, 3
      %p67 = por %p65, %p66
      %p69 = scmp.ne.s32.totalorder %s54, %s68
      %p70 = scmp.eq.s32.totalorder %s37, 0
      %p71 = por %p69, %p70
      %s73 = sadd.s32 %s72, 1
      %p76 = scmp.eq.s32.totalorder %s31, 3
      %p77 = scmp.ne.s32.totalorder %s72, %s74
      %p78 = scmp.eq.s32.totalorder %s31, 0
      %p79 = por %p77, %p78
      %p80 = scmp.ne.s32.totalorder %s72, %s74
      %p81 = scmp.eq.s32.totalorder %s36, 3
      %p82 = por %p80, %p81
      %p83 = scmp.ne.s32.totalorder %s74, %s75
      %p84 = scmp.eq.s32.totalorder %s36, 0
      %p85 = por %p83, %p84
      %p86 = scmp.ne.s32.totalorder %s74, %s75
      %p87 = scmp.eq.s32.totalorder %s37, 3
      %p88 = por %p86, %p87
      %p90 = scmp.ne.s32.totalorder %s75, %s89
      %p91 = scmp.eq.s32.totalorder %s37, 0
      %p92 = por %p90, %p91
      %s94 = sadd.s32 %s93, 1
      %p97 = scmp.eq.s32.totalorder %s31, 3
      %p98 = scmp.ne.s32.totalorder %s93, %s95
      %p99 = scmp.eq.s32.totalorder %s31, 0
      %p100 = por %p98, %p99
      %p101 = scmp.ne.s32.totalorder %s93, %s95
      %p102 = scmp.eq.s32.totalorder %s36, 3
      %p103 = por %p101, %p102
      %p104 = scmp.ne.s32.totalorder %s95, %s96
      %p105 = scmp.eq.s32.totalorder %s36, 0
      %p106 = por %p104, %p105
      %p107 = scmp.ne.s32.totalorder %s95, %s96
      %p108 = scmp.eq.s32.totalorder %s37, 3
      %p109 = por %p107, %p108
      %p111 = scmp.ne.s32.totalorder %s96, %s110
      %p112 = scmp.eq.s32.totalorder %s37, 0
      %p113 = por %p111, %p112
      %s115 = sadd.s32 %s114, 1
      %p118 = scmp.eq.s32.totalorder %s31, 3
      %p119 = scmp.ne.s32.totalorder %s114, %s116
      %p120 = scmp.eq.s32.totalorder %s31, 0
      %p121 = por %p119, %p120
      %p122 = scmp.ne.s32.totalorder %s114, %s116
      %p123 = scmp.eq.s32.totalorder %s36, 3
      %p124 = por %p122, %p123
      %p125 = scmp.ne.s32.totalorder %s116, %s117
      %p126 = scmp.eq.s32.totalorder %s36, 0
      %p127 = por %p125, %p126
      %p128 = scmp.ne.s32.totalorder %s116, %s117
      %p129 = scmp.eq.s32.totalorder %s37, 3
      %p130 = por %p128, %p129
      %p132 = scmp.ne.s32.totalorder %s117, %s131
      %p133 = scmp.eq.s32.totalorder %s37, 0
      %p134 = por %p132, %p133
      %s136 = sadd.s32 %s135, 1
      %p139 = scmp.eq.s32.totalorder %s31, 3
      %p140 = scmp.ne.s32.totalorder %s135, %s137
      %p141 = scmp.eq.s32.totalorder %s31, 0
      %p142 = por %p140, %p141
      %p143 = scmp.ne.s32.totalorder %s135, %s137
      %p144 = scmp.eq.s32.totalorder %s36, 3
      %p145 = por %p143, %p144
      %p146 = scmp.ne.s32.totalorder %s137, %s138
      %p147 = scmp.eq.s32.totalorder %s36, 0
      %p148 = por %p146, %p147
      %p149 = scmp.ne.s32.totalorder %s137, %s138
      %p150 = scmp.eq.s32.totalorder %s37, 3
      %p151 = por %p149, %p150
      %p153 = scmp.ne.s32.totalorder %s138, %s152
      %p154 = scmp.eq.s32.totalorder %s37, 0
      %p155 = por %p153, %p154
      %s157 = sadd.s32 %s156, 1
      %p160 = scmp.eq.s32.totalorder %s31, 3
      %p161 = scmp.ne.s32.totalorder %s156, %s158
      %p162 = scmp.eq.s32.totalorder %s31, 0
      %p163 = por %p161, %p162
      %p164 = scmp.ne.s32.totalorder %s156, %s158
      %p165 = scmp.eq.s32.totalorder %s36, 3
      %p166 = por %p164, %p165
      %p167 = scmp.ne.s32.totalorder %s158, %s159
      %p168 = scmp.eq.s32.totalorder %s36, 0
      %p169 = por %p167, %p168
      %p170 = scmp.ne.s32.totalorder %s158, %s159
      %p171 = scmp.eq.s32.totalorder %s37, 3
      %p172 = por %p170, %p171
      %p174 = scmp.ne.s32.totalorder %s159, %s173
      %p175 = scmp.eq.s32.totalorder %s37, 0
      %p176 = por %p174, %p175
      %s178 = sadd.s32 %s177, 1
      %p181 = scmp.eq.s32.totalorder %s31, 3
      %p182 = scmp.ne.s32.totalorder %s177, %s179
      %p183 = scmp.eq.s32.totalorder %s31, 0
      %p184 = por %p182, %p183
      %p185 = scmp.ne.s32.totalorder %s177, %s179
      %p186 = scmp.eq.s32.totalorder %s36, 3
      %p187 = por %p185, %p186
      %p188 = scmp.ne.s32.totalorder %s179, %s180
      %p189 = scmp.eq.s32.totalorder %s36, 0
      %p190 = por %p188, %p189
      %p191 = scmp.ne.s32.totalorder %s179, %s180
      %p192 = scmp.eq.s32.totalorder %s37, 3
      %p193 = por %p191, %p192
      %p195 = scmp.ne.s32.totalorder %s180, %s194
      %p196 = scmp.eq.s32.totalorder %s37, 0
      %p197 = por %p195, %p196
      %s199 = sadd.s32 %s198, 1
      %p202 = scmp.eq.s32.totalorder %s31, 3
      %p203 = scmp.ne.s32.totalorder %s198, %s200
      %p204 = scmp.eq.s32.totalorder %s31, 0
      %p205 = por %p203, %p204
      %p206 = scmp.ne.s32.totalorder %s198, %s200
      %p207 = scmp.eq.s32.totalorder %s36, 3
      %p208 = por %p206, %p207
      %p209 = scmp.ne.s32.totalorder %s200, %s201
      %p210 = scmp.eq.s32.totalorder %s36, 0
      %p211 = por %p209, %p210
      %p212 = scmp.ne.s32.totalorder %s200, %s201
      %p213 = scmp.eq.s32.totalorder %s37, 3
      %p214 = por %p212, %p213
      %p216 = scmp.ne.s32.totalorder %s201, %s215
      %p217 = scmp.eq.s32.totalorder %s37, 0
      %p218 = por %p216, %p217
      %s220 = sadd.s32 %s219, 1
      %p223 = scmp.eq.s32.totalorder %s31, 3
      %p224 = scmp.ne.s32.totalorder %s219, %s221
      %p225 = scmp.eq.s32.totalorder %s31, 0
      %p226 = por %p224, %p225
      %p227 = scmp.ne.s32.totalorder %s219, %s221
      %p228 = scmp.eq.s32.totalorder %s36, 3
      %p229 = por %p227, %p228
      %p230 = scmp.ne.s32.totalorder %s221, %s222
      %p231 = scmp.eq.s32.totalorder %s36, 0
      %p232 = por %p230, %p231
      %p233 = scmp.ne.s32.totalorder %s221, %s222
      %p234 = scmp.eq.s32.totalorder %s37, 3
      %p235 = por %p233, %p234
      %p237 = scmp.ne.s32.totalorder %s222, %s236
      %p238 = scmp.eq.s32.totalorder %s37, 0
      %p239 = por %p237, %p238
      %s241 = sadd.s32 %s240, 1
      %p244 = scmp.eq.s32.totalorder %s31, 3
      %p245 = scmp.ne.s32.totalorder %s240, %s242
      %p246 = scmp.eq.s32.totalorder %s31, 0
      %p247 = por %p245, %p246
      %p248 = scmp.ne.s32.totalorder %s240, %s242
      %p249 = scmp.eq.s32.totalorder %s36, 3
      %p250 = por %p248, %p249
      %p251 = scmp.ne.s32.totalorder %s242, %s243
      %p252 = scmp.eq.s32.totalorder %s36, 0
      %p253 = por %p251, %p252
      %p254 = scmp.ne.s32.totalorder %s242, %s243
      %p255 = scmp.eq.s32.totalorder %s37, 3
      %p256 = por %p254, %p255
      %p258 = scmp.ne.s32.totalorder %s243, %s257
      %p259 = scmp.eq.s32.totalorder %s37, 0
      %p260 = por %p258, %p259
      %s262 = sadd.s32 %s261, 1
      %p265 = scmp.eq.s32.totalorder %s31, 3
      %p266 = scmp.ne.s32.totalorder %s261, %s263
      %p267 = scmp.eq.s32.totalorder %s31, 0
      %p268 = por %p266, %p267
      %p269 = scmp.ne.s32.totalorder %s261, %s263
      %p270 = scmp.eq.s32.totalorder %s36, 3
      %p271 = por %p269, %p270
      %p272 = scmp.ne.s32.totalorder %s263, %s264
      %p273 = scmp.eq.s32.totalorder %s36, 0
      %p274 = por %p272, %p273
      %p275 = scmp.ne.s32.totalorder %s263, %s264
      %p276 = scmp.eq.s32.totalorder %s37, 3
      %p277 = por %p275, %p276
      %p279 = scmp.ne.s32.totalorder %s264, %s278
      %p280 = scmp.eq.s32.totalorder %s37, 0
      %p281 = por %p279, %p280
      %s283 = sadd.s32 %s282, 1
      %p286 = scmp.eq.s32.totalorder %s31, 3
      %p287 = scmp.ne.s32.totalorder %s282, %s284
      %p288 = scmp.eq.s32.totalorder %s31, 0
      %p289 = por %p287, %p288
      %p290 = scmp.ne.s32.totalorder %s282, %s284
      %p291 = scmp.eq.s32.totalorder %s36, 3
      %p292 = por %p290, %p291
      %p293 = scmp.ne.s32.totalorder %s284, %s285
      %p294 = scmp.eq.s32.totalorder %s36, 0
      %p295 = por %p293, %p294
      %p296 = scmp.ne.s32.totalorder %s284, %s285
      %p297 = scmp.eq.s32.totalorder %s37, 3
      %p298 = por %p296, %p297
      %p300 = scmp.ne.s32.totalorder %s285, %s299
      %p301 = scmp.eq.s32.totalorder %s37, 0
      %p302 = por %p300, %p301
      %s304 = sadd.s32 %s303, 1
      %p307 = scmp.eq.s32.totalorder %s31, 3
      %p308 = scmp.ne.s32.totalorder %s303, %s305
      %p309 = scmp.eq.s32.totalorder %s31, 0
      %p310 = por %p308, %p309
      %p311 = scmp.ne.s32.totalorder %s303, %s305
      %p312 = scmp.eq.s32.totalorder %s36, 3
      %p313 = por %p311, %p312
      %p314 = scmp.ne.s32.totalorder %s305, %s306
      %p315 = scmp.eq.s32.totalorder %s36, 0
      %p316 = por %p314, %p315
      %p317 = scmp.ne.s32.totalorder %s305, %s306
      %p318 = scmp.eq.s32.totalorder %s37, 3
      %p319 = por %p317, %p318
      %p321 = scmp.ne.s32.totalorder %s306, %s320
      %p322 = scmp.eq.s32.totalorder %s37, 0
      %p323 = por %p321, %p322
      %s325 = sadd.s32 %s324, 1
      %p328 = scmp.eq.s32.totalorder %s31, 3
      %p329 = scmp.ne.s32.totalorder %s324, %s326
      %p330 = scmp.eq.s32.totalorder %s31, 0
      %p331 = por %p329, %p330
      %p332 = scmp.ne.s32.totalorder %s324, %s326
      %p333 = scmp.eq.s32.totalorder %s36, 3
      %p334 = por %p332, %p333
      %p335 = scmp.ne.s32.totalorder %s326, %s327
      %p336 = scmp.eq.s32.totalorder %s36, 0
      %p337 = por %p335, %p336
      %p338 = scmp.ne.s32.totalorder %s326, %s327
      %p339 = scmp.eq.s32.totalorder %s37, 3
      %p340 = por %p338, %p339
      %p342 = scmp.ne.s32.totalorder %s327, %s341
      %p343 = scmp.eq.s32.totalorder %s37, 0
      %p344 = por %p342, %p343
      %s346 = sadd.s32 %s345, 1
      %p349 = scmp.eq.s32.totalorder %s31, 3
      %p350 = scmp.ne.s32.totalorder %s345, %s347
      %p351 = scmp.eq.s32.totalorder %s31, 0
      %p352 = por %p350, %p351
      %p353 = scmp.ne.s32.totalorder %s345, %s347
      %p354 = scmp.eq.s32.totalorder %s36, 3
      %p355 = por %p353, %p354
      %p356 = scmp.ne.s32.totalorder %s347, %s348
      %p357 = scmp.eq.s32.totalorder %s36, 0
      %p358 = por %p356, %p357
      %p359 = scmp.ne.s32.totalorder %s347, %s348
      %p360 = scmp.eq.s32.totalorder %s37, 3
      %p361 = por %p359, %p360
      %p363 = scmp.ne.s32.totalorder %s348, %s362
      %p364 = scmp.eq.s32.totalorder %s37, 0
      %p365 = por %p363, %p364
      %s367 = sadd.s32 %s366, 1
      %p370 = scmp.eq.s32.totalorder %s31, 3
      %p371 = scmp.ne.s32.totalorder %s366, %s368
      %p372 = scmp.eq.s32.totalorder %s31, 0
      %p373 = por %p371, %p372
      %p374 = scmp.ne.s32.totalorder %s366, %s368
      %p375 = scmp.eq.s32.totalorder %s36, 3
      %p376 = por %p374, %p375
      %p377 = scmp.ne.s32.totalorder %s368, %s369
      %p378 = scmp.eq.s32.totalorder %s36, 0
      %p379 = por %p377, %p378
      %p380 = scmp.ne.s32.totalorder %s368, %s369
      %p381 = scmp.eq.s32.totalorder %s37, 3
      %p382 = por %p380, %p381
      %p384 = scmp.ne.s32.totalorder %s369, %s383
      %p385 = scmp.eq.s32.totalorder %s37, 0
      %p386 = por %p384, %p385
      %s388 = sadd.s32 %s387, 1
      %p391 = scmp.eq.s32.totalorder %s31, 3
      %p392 = scmp.ne.s32.totalorder %s387, %s389
      %p393 = scmp.eq.s32.totalorder %s31, 0
      %p394 = por %p392, %p393
      %p395 = scmp.ne.s32.totalorder %s387, %s389
      %p396 = scmp.eq.s32.totalorder %s36, 3
      %p397 = por %p395, %p396
      %p398 = scmp.ne.s32.totalorder %s389, %s390
      %p399 = scmp.eq.s32.totalorder %s36, 0
      %p400 = por %p398, %p399
      %p401 = scmp.ne.s32.totalorder %s389, %s390
      %p402 = scmp.eq.s32.totalorder %s37, 3
      %p403 = por %p401, %p402
      %p405 = scmp.ne.s32.totalorder %s390, %s404
      %p406 = scmp.eq.s32.totalorder %s37, 0
      %p407 = por %p405, %p406
      %s409 = sadd.s32 %s408, 1
      %p412 = scmp.eq.s32.totalorder %s31, 3
      %p413 = scmp.ne.s32.totalorder %s408, %s410
      %p414 = scmp.eq.s32.totalorder %s31, 0
      %p415 = por %p413, %p414
      %p416 = scmp.ne.s32.totalorder %s408, %s410
      %p417 = scmp.eq.s32.totalorder %s36, 3
      %p418 = por %p416, %p417
      %p419 = scmp.ne.s32.totalorder %s410, %s411
      %p420 = scmp.eq.s32.totalorder %s36, 0
      %p421 = por %p419, %p420
      %p422 = scmp.ne.s32.totalorder %s410, %s411
      %p423 = scmp.eq.s32.totalorder %s37, 3
      %p424 = por %p422, %p423
      %p426 = scmp.ne.s32.totalorder %s411, %s425
      %p427 = scmp.eq.s32.totalorder %s37, 0
      %p428 = por %p426, %p427
      %s430 = sadd.s32 %s429, 1
      %p433 = scmp.eq.s32.totalorder %s31, 3
      %p434 = scmp.ne.s32.totalorder %s429, %s431
      %p435 = scmp.eq.s32.totalorder %s31, 0
      %p436 = por %p434, %p435
      %p437 = scmp.ne.s32.totalorder %s429, %s431
      %p438 = scmp.eq.s32.totalorder %s36, 3
      %p439 = por %p437, %p438
      %p440 = scmp.ne.s32.totalorder %s431, %s432
      %p441 = scmp.eq.s32.totalorder %s36, 0
      %p442 = por %p440, %p441
      %p443 = scmp.ne.s32.totalorder %s431, %s432
      %p444 = scmp.eq.s32.totalorder %s37, 3
      %p445 = por %p443, %p444
      %p447 = scmp.ne.s32.totalorder %s432, %s446
      %p448 = scmp.eq.s32.totalorder %s37, 0
      %p449 = por %p447, %p448
      %p450 = scmp.le.s32.totalorder 1, %s31
      %p451 = scmp.lt.s32.totalorder %s31, 5
      %p452 = pnand %p450, %p451
      %p453 = pneg %p452
      // Predicated region
      $region9: #{triplet_imp_pallas.1} parent=5 // pred_check
        _
      $region10: #{triplet_imp_pallas.1} parent=5 // pred_check_branch
        %455 = sbr.rel (%p452) target = $region12
      $region11: #{triplet_imp_pallas.1} parent=5 // pred_region
        %s456 = ssub.s32 %s31, 1
        // Predicated region
        $region13: #{triplet_imp_pallas.1} parent=11 // pred_check
          %p457 = pneg %p64
        $region14: #{triplet_imp_pallas.1} parent=11 // pred_check_branch
          %459 = sbr.rel (%p457) target = $region16
        $region15: #{triplet_imp_pallas.1} parent=11 // pred_region
          _
        $region16: #{triplet_imp_pallas.1} parent=11 // pred_fallthru
          _
        // Predicated region
        $region17: #{triplet_imp_pallas.1} parent=11 // pred_check
          %p460 = pneg %p85
        $region18: #{triplet_imp_pallas.1} parent=11 // pred_check_branch
          %462 = sbr.rel (%p460) target = $region20
        $region19: #{triplet_imp_pallas.1} parent=11 // pred_region
          %464 = vsyncadd [#allocation7], 0
          %s465 = sshll.u32 %s1, 4
          %s466 = int_to_ptr.hbm [resolvable:$true] %s465
          %s467 = sshll.u32 [#allocation6], 4
          %s468 = int_to_ptr.vmem [resolvable:$true] %s467
          %473 = dma.hbm_to_vmem [thread:$0]  %s466, 256, %s468, [#allocation7], 128, 128, 8
        $region20: #{triplet_imp_pallas.1} parent=11 // pred_fallthru
          _
        // Predicated region
        $region21: #{triplet_imp_pallas.1} parent=11 // pred_check
          %p474 = pneg %p106
        $region22: #{triplet_imp_pallas.1} parent=11 // pred_check_branch
          %476 = sbr.rel (%p474) target = $region24
        $region23: #{triplet_imp_pallas.1} parent=11 // pred_region
          _
        $region24: #{triplet_imp_pallas.1} parent=11 // pred_fallthru
          _
        // Predicated region
        $region25: #{triplet_imp_pallas.1} parent=11 // pred_check
          %p477 = pneg %p127
        $region26: #{triplet_imp_pallas.1} parent=11 // pred_check_branch
          %479 = sbr.rel (%p477) target = $region28
        $region27: #{triplet_imp_pallas.1} parent=11 // pred_region
          _
        $region28: #{triplet_imp_pallas.1} parent=11 // pred_fallthru
          _
        // Predicated region
        $region29: #{triplet_imp_pallas.1} parent=11 // pred_check
          %p480 = pneg %p148
        $region30: #{triplet_imp_pallas.1} parent=11 // pred_check_branch
          %482 = sbr.rel (%p480) target = $region32
        $region31: #{triplet_imp_pallas.1} parent=11 // pred_region
          _
        $region32: #{triplet_imp_pallas.1} parent=11 // pred_fallthru
          _
        // Predicated region
        $region33: #{triplet_imp_pallas.1} parent=11 // pred_check
          %p483 = pneg %p169
        $region34: #{triplet_imp_pallas.1} parent=11 // pred_check_branch
          %485 = sbr.rel (%p483) target = $region36
        $region35: #{triplet_imp_pallas.1} parent=11 // pred_region
          _
        $region36: #{triplet_imp_pallas.1} parent=11 // pred_fallthru
          _
        // Predicated region
        $region37: #{triplet_imp_pallas.1} parent=11 // pred_check
          %p486 = pneg %p190
        $region38: #{triplet_imp_pallas.1} parent=11 // pred_check_branch
          %488 = sbr.rel (%p486) target = $region40
        $region39: #{triplet_imp_pallas.1} parent=11 // pred_region
          %490 = vsyncadd [#allocation10], 0
          %s491 = sshll.u32 %s6, 4
          %s492 = int_to_ptr.hbm [resolvable:$true] %s491
          %s493 = sshll.u32 [#allocation9], 4
          %s494 = int_to_ptr.vmem [resolvable:$true] %s493
          %499 = dma.hbm_to_vmem [thread:$0]  %s492, 512, %s494, [#allocation10], 128, 128, 8
        $region40: #{triplet_imp_pallas.1} parent=11 // pred_fallthru
          _
        // Predicated region
        $region41: #{triplet_imp_pallas.1} parent=11 // pred_check
          %p500 = pneg %p211
        $region42: #{triplet_imp_pallas.1} parent=11 // pred_check_branch
          %502 = sbr.rel (%p500) target = $region44
        $region43: #{triplet_imp_pallas.1} parent=11 // pred_region
          %504 = vsyncadd [#allocation10], 0
          %s505 = sshll.u32 %s7, 4
          %s506 = int_to_ptr.hbm [resolvable:$true] %s505
          %s507 = sshll.u32 [#allocation11], 4
          %s508 = int_to_ptr.vmem [resolvable:$true] %s507
          %513 = dma.hbm_to_vmem [thread:$0]  %s506, 512, %s508, [#allocation10], 128, 128, 8
        $region44: #{triplet_imp_pallas.1} parent=11 // pred_fallthru
          _
        // Predicated region
        $region45: #{triplet_imp_pallas.1} parent=11 // pred_check
          %p514 = pneg %p232
        $region46: #{triplet_imp_pallas.1} parent=11 // pred_check_branch
          %516 = sbr.rel (%p514) target = $region48
        $region47: #{triplet_imp_pallas.1} parent=11 // pred_region
          _
        $region48: #{triplet_imp_pallas.1} parent=11 // pred_fallthru
          _
        // Predicated region
        $region49: #{triplet_imp_pallas.1} parent=11 // pred_check
          %p517 = pneg %p253
        $region50: #{triplet_imp_pallas.1} parent=11 // pred_check_branch
          %519 = sbr.rel (%p517) target = $region52
        $region51: #{triplet_imp_pallas.1} parent=11 // pred_region
          %521 = vsyncadd [#allocation13], 0
          %s522 = sshll.u32 %s9, 4
          %s523 = int_to_ptr.hbm [resolvable:$true] %s522
          %s524 = sshll.u32 [#allocation12], 4
          %s525 = int_to_ptr.vmem [resolvable:$true] %s524
          %530 = dma.hbm_to_vmem [thread:$0]  %s523, 512, %s525, [#allocation13], 128, 128, 8
        $region52: #{triplet_imp_pallas.1} parent=11 // pred_fallthru
          _
        // Predicated region
        $region53: #{triplet_imp_pallas.1} parent=11 // pred_check
          %p531 = pneg %p274
        $region54: #{triplet_imp_pallas.1} parent=11 // pred_check_branch
          %533 = sbr.rel (%p531) target = $region56
        $region55: #{triplet_imp_pallas.1} parent=11 // pred_region
          %535 = vsyncadd [#allocation13], 0
          %s536 = sshll.u32 %s10, 4
          %s537 = int_to_ptr.hbm [resolvable:$true] %s536
          %s538 = sshll.u32 [#allocation14], 4
          %s539 = int_to_ptr.vmem [resolvable:$true] %s538
          %544 = dma.hbm_to_vmem [thread:$0]  %s537, 512, %s539, [#allocation13], 128, 128, 8
        $region56: #{triplet_imp_pallas.1} parent=11 // pred_fallthru
          _
        // Predicated region
        $region57: #{triplet_imp_pallas.1} parent=11 // pred_check
          %p545 = pneg %p295
        $region58: #{triplet_imp_pallas.1} parent=11 // pred_check_branch
          %547 = sbr.rel (%p545) target = $region60
        $region59: #{triplet_imp_pallas.1} parent=11 // pred_region
          _
        $region60: #{triplet_imp_pallas.1} parent=11 // pred_fallthru
          _
        // Predicated region
        $region61: #{triplet_imp_pallas.1} parent=11 // pred_check
          %p548 = pneg %p316
        $region62: #{triplet_imp_pallas.1} parent=11 // pred_check_branch
          %550 = sbr.rel (%p548) target = $region64
        $region63: #{triplet_imp_pallas.1} parent=11 // pred_region
          _
        $region64: #{triplet_imp_pallas.1} parent=11 // pred_fallthru
          _
        // Predicated region
        $region65: #{triplet_imp_pallas.1} parent=11 // pred_check
          %p551 = pneg %p337
        $region66: #{triplet_imp_pallas.1} parent=11 // pred_check_branch
          %553 = sbr.rel (%p551) target = $region68
        $region67: #{triplet_imp_pallas.1} parent=11 // pred_region
          %555 = vsyncadd [#allocation16], 0
          %s556 = sshll.u32 %s13, 4
          %s557 = int_to_ptr.hbm [resolvable:$true] %s556
          %s558 = sshll.u32 [#allocation15], 4
          %s559 = int_to_ptr.vmem [resolvable:$true] %s558
          %564 = dma.hbm_to_vmem [thread:$0]  %s557, 512, %s559, [#allocation16], 128, 128, 8
        $region68: #{triplet_imp_pallas.1} parent=11 // pred_fallthru
          _
        // Predicated region
        $region69: #{triplet_imp_pallas.1} parent=11 // pred_check
          %p565 = pneg %p358
        $region70: #{triplet_imp_pallas.1} parent=11 // pred_check_branch
          %567 = sbr.rel (%p565) target = $region72
        $region71: #{triplet_imp_pallas.1} parent=11 // pred_region
          %569 = vsyncadd [#allocation16], 0
          %s570 = sshll.u32 %s14, 4
          %s571 = int_to_ptr.hbm [resolvable:$true] %s570
          %s572 = sshll.u32 [#allocation17], 4
          %s573 = int_to_ptr.vmem [resolvable:$true] %s572
          %578 = dma.hbm_to_vmem [thread:$0]  %s571, 512, %s573, [#allocation16], 128, 128, 8
        $region72: #{triplet_imp_pallas.1} parent=11 // pred_fallthru
          _
        // Predicated region
        $region73: #{triplet_imp_pallas.1} parent=11 // pred_check
          %p579 = pneg %p379
        $region74: #{triplet_imp_pallas.1} parent=11 // pred_check_branch
          %581 = sbr.rel (%p579) target = $region76
        $region75: #{triplet_imp_pallas.1} parent=11 // pred_region
          _
        $region76: #{triplet_imp_pallas.1} parent=11 // pred_fallthru
          _
        // Predicated region
        $region77: #{triplet_imp_pallas.1} parent=11 // pred_check
          %p582 = pneg %p400
        $region78: #{triplet_imp_pallas.1} parent=11 // pred_check_branch
          %584 = sbr.rel (%p582) target = $region80
        $region79: #{triplet_imp_pallas.1} parent=11 // pred_region
          _
        $region80: #{triplet_imp_pallas.1} parent=11 // pred_fallthru
          _
      $region12: #{triplet_imp_pallas.1} parent=5 // pred_fallthru
        _
      %p585 = scmp.lt.s32.totalorder %s31, 4
      // Predicated region
      $region81: #{triplet_imp_pallas.1} parent=5 // pred_check
        %p586 = pneg %p585
      $region82: #{triplet_imp_pallas.1} parent=5 // pred_check_branch
        %588 = sbr.rel (%p586) target = $region84
      $region83: #{triplet_imp_pallas.1} parent=5 // pred_region
        _
      $region84: #{triplet_imp_pallas.1} parent=5 // pred_fallthru
        _
      %p589 = scmp.le.s32.totalorder 1, %s31
      %p590 = scmp.lt.s32.totalorder %s31, 5
      %p591 = pnand %p589, %p590
      %p592 = pneg %p591
      // Predicated region
      $region85: #{triplet_imp_pallas.1} parent=5 // pred_check
        _
      $region86: #{triplet_imp_pallas.1} parent=5 // pred_check_branch
        %594 = sbr.rel (%p591) target = $region88
      $region87: #{triplet_imp_pallas.1} parent=5 // pred_region
        %s595 = ssub.s32 %s31, 1
        // Predicated region
        $region89: #{triplet_imp_pallas.1} parent=87 // pred_check
          %p596 = pneg %p85
        $region90: #{triplet_imp_pallas.1} parent=87 // pred_check_branch
          %598 = sbr.rel (%p596) target = $region92
        $region91: #{triplet_imp_pallas.1} parent=87 // pred_region
          %600 = dma.done [#allocation7], 256
        $region92: #{triplet_imp_pallas.1} parent=87 // pred_fallthru
          _
        // Predicated region
        $region93: #{triplet_imp_pallas.1} parent=87 // pred_check
          %p601 = pneg %p190
        $region94: #{triplet_imp_pallas.1} parent=87 // pred_check_branch
          %603 = sbr.rel (%p601) target = $region96
        $region95: #{triplet_imp_pallas.1} parent=87 // pred_region
          %605 = dma.done [#allocation10], 512
        $region96: #{triplet_imp_pallas.1} parent=87 // pred_fallthru
          _
        // Predicated region
        $region97: #{triplet_imp_pallas.1} parent=87 // pred_check
          %p606 = pneg %p211
        $region98: #{triplet_imp_pallas.1} parent=87 // pred_check_branch
          %608 = sbr.rel (%p606) target = $region100
        $region99: #{triplet_imp_pallas.1} parent=87 // pred_region
          %610 = dma.done [#allocation10], 512
        $region100: #{triplet_imp_pallas.1} parent=87 // pred_fallthru
          _
        // Predicated region
        $region101: #{triplet_imp_pallas.1} parent=87 // pred_check
          %p611 = pneg %p253
        $region102: #{triplet_imp_pallas.1} parent=87 // pred_check_branch
          %613 = sbr.rel (%p611) target = $region104
        $region103: #{triplet_imp_pallas.1} parent=87 // pred_region
          %615 = dma.done [#allocation13], 512
        $region104: #{triplet_imp_pallas.1} parent=87 // pred_fallthru
          _
        // Predicated region
        $region105: #{triplet_imp_pallas.1} parent=87 // pred_check
          %p616 = pneg %p274
        $region106: #{triplet_imp_pallas.1} parent=87 // pred_check_branch
          %618 = sbr.rel (%p616) target = $region108
        $region107: #{triplet_imp_pallas.1} parent=87 // pred_region
          %620 = dma.done [#allocation13], 512
        $region108: #{triplet_imp_pallas.1} parent=87 // pred_fallthru
          _
        // Predicated region
        $region109: #{triplet_imp_pallas.1} parent=87 // pred_check
          %p621 = pneg %p337
        $region110: #{triplet_imp_pallas.1} parent=87 // pred_check_branch
          %623 = sbr.rel (%p621) target = $region112
        $region111: #{triplet_imp_pallas.1} parent=87 // pred_region
          %625 = dma.done [#allocation16], 512
        $region112: #{triplet_imp_pallas.1} parent=87 // pred_fallthru
          _
        // Predicated region
        $region113: #{triplet_imp_pallas.1} parent=87 // pred_check
          %p626 = pneg %p358
        $region114: #{triplet_imp_pallas.1} parent=87 // pred_check_branch
          %628 = sbr.rel (%p626) target = $region116
        $region115: #{triplet_imp_pallas.1} parent=87 // pred_region
          %630 = dma.done [#allocation16], 512
        $region116: #{triplet_imp_pallas.1} parent=87 // pred_fallthru
          _
        %p631 = pneg %p64
        %p632 = pneg %p61
        %p633 = pneg %p85
        %p634 = pneg %p82
        %p635 = pneg %p106
        %p636 = pneg %p103
        %p637 = pneg %p127
        %p638 = pneg %p124
        %p639 = pneg %p148
        %p640 = pneg %p145
        %p641 = pneg %p169
        %p642 = pneg %p166
        %p643 = pneg %p190
        %p644 = pneg %p187
        %p645 = pneg %p211
        %p646 = pneg %p208
        %p647 = pneg %p232
        %p648 = pneg %p229
        %p649 = pneg %p253
        %p650 = pneg %p250
        %p651 = pneg %p274
        %p652 = pneg %p271
        %p653 = pneg %p295
        %p654 = pneg %p292
        %p655 = pneg %p316
        %p656 = pneg %p313
        %p657 = pneg %p337
        %p658 = pneg %p334
        %p659 = pneg %p358
        %p660 = pneg %p355
        %p661 = pneg %p379
        %p662 = pneg %p376
        %p663 = pneg %p400
        %p664 = pneg %p397
        %p665 = pneg %p421
        %p666 = pneg %p418
        %p667 = pneg %p442
        %p668 = pneg %p439
        %p669 = scmp.eq.s32.totalorder %s40, 0
        %p670 = scmp.eq.s32.totalorder %s41, 0
        %p671 = pnand %p669, %p670
        %p672 = pneg %p671
        // Predicated region
        $region117: #{triplet_imp_pallas.1} parent=87 // pred_check
          _
        $region118: #{triplet_imp_pallas.1} parent=87 // pred_check_branch
          %674 = sbr.rel (%p671) target = $region120
        $region119: #{triplet_imp_pallas.1} parent=87 // pred_region
          %v675 = vlaneseq
          %v676 = vand.u32 %v675, 127
          %vm677 = vcmask 64512
          %678 = vst.msk [vmem:[#allocation4] sm:$0xff] %vm677, %v676
          %v679 = vlaneseq
          %v680 = vshrl.u32 %v679, 7
          %681 = vst.msk [vmem:[#allocation5] sm:$0xff] %vm677, %v680
          %vm682 = vcmask 7168
          %683 = vst.msk [vmem:[#allocation3] sm:$0xff] %vm682, 0.0
          %v684 = vld [vmem:[%s0] sm:$0xff]
          %v685 = vld [vmem:[#allocation12] sm:$0xff]
          %v686 = vld [vmem:[#allocation12 + $0x8] sm:$0xff]
          %v687 = vld [vmem:[#allocation12 + $0x10] sm:$0xff]
          %v688 = vld [vmem:[#allocation12 + $0x18] sm:$0xff]
          %v689 = vld [vmem:[#allocation14] sm:$0xff]
          %v690 = vld [vmem:[#allocation14 + $0x8] sm:$0xff]
          %v691 = vld [vmem:[#allocation14 + $0x10] sm:$0xff]
          %v692 = vld [vmem:[#allocation14 + $0x18] sm:$0xff]
          %v693 = vld [vmem:[%s11] sm:$0x1]
          %v694 = vld [vmem:[%s12] sm:$0x1]
          %v696 = vperm.slane %v693, 0
          %vm698 = vcmask 261120
          %v700 = vsel %vm698, %v684, 0
          %702 = vmatpush.msra.mxu0 0.0
          %703 = vmatpush.msra.mxu0 0.0
          %704 = vmatpush.msra.mxu0 0.0
          %705 = vmatpush.msra.mxu0 0.0
          %706 = vmatpush.msra.mxu0 0.0
          %707 = vmatpush.msra.mxu0 0.0
          %708 = vmatpush.msra.mxu0 0.0
          %709 = vmatpush.msra.mxu0 0.0
          %710 = vmatpush.msra.mxu0 0.0
          %711 = vmatpush.msra.mxu0 0.0
          %712 = vmatpush.msra.mxu0 0.0
          %713 = vmatpush.msra.mxu0 0.0
          %714 = vmatpush.msra.mxu0 %v688
          %715 = vmatpush.msra.mxu0 %v687
          %716 = vmatpush.msra.mxu0 %v686
          %717 = vmatpush.msra.mxu0 %v685
          %718 = vmatmul.f32.gmra.mxu0 %v700
          %v719 = vpop.f32.mrf.mxu0
          %v720 = vadd.f32 %v696, %v719
          %721 = vdwg.mxu0
          %v723 = vperm.slane %v694, 0
          %v726 = vsel %vm698, 0.0, 0
          %728 = vmatpush.msra.mxu0 0.0
          %729 = vmatpush.msra.mxu0 0.0
          %730 = vmatpush.msra.mxu0 0.0
          %731 = vmatpush.msra.mxu0 0.0
          %732 = vmatpush.msra.mxu0 0.0
          %733 = vmatpush.msra.mxu0 0.0
          %734 = vmatpush.msra.mxu0 0.0
          %735 = vmatpush.msra.mxu0 0.0
          %736 = vmatpush.msra.mxu0 0.0
          %737 = vmatpush.msra.mxu0 0.0
          %738 = vmatpush.msra.mxu0 0.0
          %739 = vmatpush.msra.mxu0 0.0
          %740 = vmatpush.msra.mxu0 %v692
          %741 = vmatpush.msra.mxu0 %v691
          %742 = vmatpush.msra.mxu0 %v690
          %743 = vmatpush.msra.mxu0 %v689
          %744 = vmatmul.f32.gmra.mxu0 %v726
          %v745 = vpop.f32.mrf.mxu0
          %v746 = vadd.f32 %v723, %v745
          %747 = vdwg.mxu0
          %v748 = vadd.f32 %v720, %v746
          %v749 = vmul.f32 %v748, 0.5
          %v750 = vtanh.pop %v749
          %v751 = vmul.f32 %v750, 0.5
          %v752 = vadd.f32 %v751, 0.5
          %754 = vrot.lane.b32.xlu0 %v746, 64
          %v755 = vpop.permute.xlu0 %754
          %v757 = vmul.f32 %v752, %v755
          %759 = vrot.lane.b32.xlu0 %v757, 64
          %v760 = vpop.permute.xlu0 %759
          %v762 = vadd.f32 %v720, %v760
          %v763 = vtanh.pop %v762
          %v764 = vsub.f32 1.0, %v752
          %766 = vrot.lane.b32.xlu0 %v763, 96
          %v767 = vpop.permute.xlu0 %766
          %v769 = vmul.f32 %v764, %v767
          %v770 = vmul.f32 %v752, 0.0
          %v771 = vadd.f32 %v769, %v770
          %773 = vrot.lane.b32.xlu0 %v771, 96
          %v774 = vpop.permute.xlu0 %773
          %776 = vst.msk [vmem:[#allocation18] sm:$0xff] %vm698, %v774
        $region120: #{triplet_imp_pallas.1} parent=87 // pred_fallthru
          _
        // Predicated region
        $region121: #{triplet_imp_pallas.1} parent=87 // pred_check
          %p777 = pneg %p669
        $region122: #{triplet_imp_pallas.1} parent=87 // pred_check_branch
          %779 = sbr.rel (%p777) target = $region124
        $region123: #{triplet_imp_pallas.1} parent=87 // pred_region
          %s780 = smul.u32 %s41, 8
          %s781 = scalar_lea.vmem [#allocation6], %s780
          %v782 = vld [vmem:[%s781] sm:$0xff]
          %v783 = vld [vmem:[#allocation15] sm:$0xff]
          %v784 = vld [vmem:[#allocation15 + $0x8] sm:$0xff]
          %v785 = vld [vmem:[#allocation15 + $0x10] sm:$0xff]
          %v786 = vld [vmem:[#allocation15 + $0x18] sm:$0xff]
          %v787 = vld [vmem:[#allocation17] sm:$0xff]
          %v788 = vld [vmem:[#allocation17 + $0x8] sm:$0xff]
          %v789 = vld [vmem:[#allocation17 + $0x10] sm:$0xff]
          %v790 = vld [vmem:[#allocation17 + $0x18] sm:$0xff]
          %v791 = vld [vmem:[%s15] sm:$0x1]
          %v792 = vld [vmem:[%s16] sm:$0x1]
          %v794 = vperm.slane %v791, 0
          %vm796 = vcmask 261120
          %v798 = vsel %vm796, %v782, 0
          %800 = vmatpush.msra.mxu0 0.0
          %801 = vmatpush.msra.mxu0 0.0
          %802 = vmatpush.msra.mxu0 0.0
          %803 = vmatpush.msra.mxu0 0.0
          %804 = vmatpush.msra.mxu0 0.0
          %805 = vmatpush.msra.mxu0 0.0
          %806 = vmatpush.msra.mxu0 0.0
          %807 = vmatpush.msra.mxu0 0.0
          %808 = vmatpush.msra.mxu0 0.0
          %809 = vmatpush.msra.mxu0 0.0
          %810 = vmatpush.msra.mxu0 0.0
          %811 = vmatpush.msra.mxu0 0.0
          %812 = vmatpush.msra.mxu0 %v786
          %813 = vmatpush.msra.mxu0 %v785
          %814 = vmatpush.msra.mxu0 %v784
          %815 = vmatpush.msra.mxu0 %v783
          %816 = vmatmul.f32.gmra.mxu0 %v798
          %v817 = vpop.f32.mrf.mxu0
          %v818 = vadd.f32 %v794, %v817
          %819 = vdwg.mxu0
          %v821 = vperm.slane %v792, 0
          %v824 = vsel %vm796, 0.0, 0
          %826 = vmatpush.msra.mxu0 0.0
          %827 = vmatpush.msra.mxu0 0.0
          %828 = vmatpush.msra.mxu0 0.0
          %829 = vmatpush.msra.mxu0 0.0
          %830 = vmatpush.msra.mxu0 0.0
          %831 = vmatpush.msra.mxu0 0.0
          %832 = vmatpush.msra.mxu0 0.0
          %833 = vmatpush.msra.mxu0 0.0
          %834 = vmatpush.msra.mxu0 0.0
          %835 = vmatpush.msra.mxu0 0.0
          %836 = vmatpush.msra.mxu0 0.0
          %837 = vmatpush.msra.mxu0 0.0
          %838 = vmatpush.msra.mxu0 %v790
          %839 = vmatpush.msra.mxu0 %v789
          %840 = vmatpush.msra.mxu0 %v788
          %841 = vmatpush.msra.mxu0 %v787
          %842 = vmatmul.f32.gmra.mxu0 %v824
          %v843 = vpop.f32.mrf.mxu0
          %v844 = vadd.f32 %v821, %v843
          %845 = vdwg.mxu0
          %v846 = vadd.f32 %v818, %v844
          %v847 = vmul.f32 %v846, 0.5
          %v848 = vtanh.pop %v847
          %v849 = vmul.f32 %v848, 0.5
          %v850 = vadd.f32 %v849, 0.5
          %852 = vrot.lane.b32.xlu0 %v844, 64
          %v853 = vpop.permute.xlu0 %852
          %v855 = vmul.f32 %v850, %v853
          %857 = vrot.lane.b32.xlu0 %v855, 64
          %v858 = vpop.permute.xlu0 %857
          %v860 = vadd.f32 %v818, %v858
          %v861 = vtanh.pop %v860
          %v862 = vsub.f32 1.0, %v850
          %864 = vrot.lane.b32.xlu0 %v861, 96
          %v865 = vpop.permute.xlu0 %864
          %v867 = vmul.f32 %v862, %v865
          %v868 = vmul.f32 %v850, 0.0
          %v869 = vadd.f32 %v867, %v868
          %871 = vrot.lane.b32.xlu0 %v869, 96
          %v872 = vpop.permute.xlu0 %871
          %s874 = scalar_lea.vmem [#allocation19], %s780
          %875 = vst.msk [vmem:[%s874] sm:$0xff] %vm796, %v872
        $region124: #{triplet_imp_pallas.1} parent=87 // pred_fallthru
          _
        // Predicated region
        $region125: #{triplet_imp_pallas.1} parent=87 // pred_check
          %p876 = pneg %p670
        $region126: #{triplet_imp_pallas.1} parent=87 // pred_check_branch
          %878 = sbr.rel (%p876) target = $region128
        $region127: #{triplet_imp_pallas.1} parent=87 // pred_region
          %vm879 = vcmask 261120
          %880 = vst.msk [vmem:[#allocation2] sm:$0xff] %vm879, 0.0
        $region128: #{triplet_imp_pallas.1} parent=87 // pred_fallthru
          _
        %v881 = vld [vmem:[#allocation18] sm:$0xff]
        %s882 = smul.u32 %s41, 8
        %s883 = scalar_lea.vmem [#allocation19], %s882
        %v884 = vld [vmem:[%s883] sm:$0xff]
        %s885 = scalar_lea.vmem %s2, %s882
        %v886 = vld [vmem:[%s885] sm:$0xff]
        %s887 = scalar_lea.vmem %s3, %s882
        %v888 = vld [vmem:[%s887] sm:$0xff]
        %s889 = scalar_lea.vmem %s4, %s41
        %v890 = vld [vmem:[%s889] sm:$0x1]
        %v891 = vld [vmem:[#allocation4] sm:$0xff]
        %892 = vset.pattern.permute.xlu0 0
        %893 = vperm.xlu0 %892, %v886
        %v894 = vpop.permute.xlu0 %893
        %vm895 = vcmp.eq.s32.totalorder %v891, %v894
        %v896 = vsel %vm895, 1, 0
        %v897 = vcvt.s32.f32 %v896
        %898 = vset.pattern.permute.xlu0 0
        %899 = vperm.xlu0 %898, %v888
        %v900 = vpop.permute.xlu0 %899
        %vm901 = vcmp.eq.s32.totalorder %v891, %v900
        %v902 = vsel %vm901, 1, 0
        %v903 = vcvt.s32.f32 %v902
        %v904 = vld [vmem:[#allocation5] sm:$0xff]
        %v905 = vperm.slane %v890, 0
        %vm906 = vcmp.eq.s32.totalorder %v904, %v905
        %v907 = vsel %vm906, 1, 0
        %v908 = vcvt.s32.f32 %v907
        %vm909 = vcmask 64512
        %v911 = vsel %vm909, %v897, 0
        %913 = vmatpush.msra.mxu0 0.0
        %914 = vmatpush.msra.mxu0 0.0
        %915 = vmatpush.msra.mxu0 0.0
        %916 = vmatpush.msra.mxu0 0.0
        %917 = vmatpush.msra.mxu0 0.0
        %918 = vmatpush.msra.mxu0 0.0
        %919 = vmatpush.msra.mxu0 0.0
        %920 = vmatpush.msra.mxu0 0.0
        %921 = vmatpush.msra.mxu0 0.0
        %922 = vmatpush.msra.mxu0 0.0
        %923 = vmatpush.msra.mxu0 0.0
        %924 = vmatpush.msra.mxu0 0.0
        %925 = vmatpush.msra.mxu0 0.0
        %926 = vmatpush.msra.mxu0 0.0
        %927 = vmatpush.msra.mxu0 0.0
        %928 = vmatpush.msra.mxu0 %v881
        %929 = vmatmul.f32.gmra.mxu0 %v911
        %v930 = vpop.f32.mrf.mxu0
        %v931 = vadd.f32 0.0, %v930
        %932 = vdwg.mxu0
        %v934 = vsel %vm909, %v903, 0
        %936 = vmatpush.msra.mxu0 0.0
        %937 = vmatpush.msra.mxu0 0.0
        %938 = vmatpush.msra.mxu0 0.0
        %939 = vmatpush.msra.mxu0 0.0
        %940 = vmatpush.msra.mxu0 0.0
        %941 = vmatpush.msra.mxu0 0.0
        %942 = vmatpush.msra.mxu0 0.0
        %943 = vmatpush.msra.mxu0 0.0
        %944 = vmatpush.msra.mxu0 0.0
        %945 = vmatpush.msra.mxu0 0.0
        %946 = vmatpush.msra.mxu0 0.0
        %947 = vmatpush.msra.mxu0 0.0
        %948 = vmatpush.msra.mxu0 0.0
        %949 = vmatpush.msra.mxu0 0.0
        %950 = vmatpush.msra.mxu0 0.0
        %951 = vmatpush.msra.mxu0 %v881
        %952 = vmatmul.f32.gmra.mxu0 %v934
        %v953 = vpop.f32.mrf.mxu0
        %v954 = vadd.f32 0.0, %v953
        %955 = vdwg.mxu0
        %v956 = vld [vmem:[%s5] sm:$0xff]
        %v957 = vld [vmem:[%s5 + $0x8] sm:$0xff]
        %v958 = vld [vmem:[%s5 + $0x10] sm:$0xff]
        %v959 = vld [vmem:[%s5 + $0x18] sm:$0xff]
        %v960 = vld [vmem:[#allocation9] sm:$0xff]
        %v961 = vld [vmem:[#allocation9 + $0x8] sm:$0xff]
        %v962 = vld [vmem:[#allocation9 + $0x10] sm:$0xff]
        %v963 = vld [vmem:[#allocation9 + $0x18] sm:$0xff]
        %vm964 = vcmask 261120
        %v966 = vsel %vm964, %v884, 0
        %968 = vmatpush.msra.mxu0 0.0
        %969 = vmatpush.msra.mxu0 0.0
        %970 = vmatpush.msra.mxu0 0.0
        %971 = vmatpush.msra.mxu0 0.0
        %972 = vmatpush.msra.mxu0 0.0
        %973 = vmatpush.msra.mxu0 0.0
        %974 = vmatpush.msra.mxu0 0.0
        %975 = vmatpush.msra.mxu0 0.0
        %976 = vmatpush.msra.mxu0 0.0
        %977 = vmatpush.msra.mxu0 0.0
        %978 = vmatpush.msra.mxu0 0.0
        %979 = vmatpush.msra.mxu0 0.0
        %980 = vmatpush.msra.mxu0 %v963
        %981 = vmatpush.msra.mxu0 %v962
        %982 = vmatpush.msra.mxu0 %v961
        %983 = vmatpush.msra.mxu0 %v960
        %984 = vmatmul.f32.gmra.mxu0 %v966
        %v985 = vpop.f32.mrf.mxu0
        %v986 = vadd.f32 0.0, %v985
        %987 = vdwg.mxu0
        %v989 = vsel %vm964, %v931, 0
        %991 = vmatpush.msra.mxu0 0.0
        %992 = vmatpush.msra.mxu0 0.0
        %993 = vmatpush.msra.mxu0 0.0
        %994 = vmatpush.msra.mxu0 0.0
        %995 = vmatpush.msra.mxu0 0.0
        %996 = vmatpush.msra.mxu0 0.0
        %997 = vmatpush.msra.mxu0 0.0
        %998 = vmatpush.msra.mxu0 0.0
        %999 = vmatpush.msra.mxu0 0.0
        %1000 = vmatpush.msra.mxu0 0.0
        %1001 = vmatpush.msra.mxu0 0.0
        %1002 = vmatpush.msra.mxu0 0.0
        %1003 = vmatpush.msra.mxu0 %v959
        %1004 = vmatpush.msra.mxu0 %v958
        %1005 = vmatpush.msra.mxu0 %v957
        %1006 = vmatpush.msra.mxu0 %v956
        %1007 = vmatmul.f32.gmra.mxu0 %v989
        %v1008 = vpop.f32.mrf.mxu0
        %v1009 = vadd.f32 %v986, %v1008
        %1010 = vdwg.mxu0
        %v1011 = vld [vmem:[#allocation11] sm:$0xff]
        %v1012 = vld [vmem:[#allocation11 + $0x8] sm:$0xff]
        %v1013 = vld [vmem:[#allocation11 + $0x10] sm:$0xff]
        %v1014 = vld [vmem:[#allocation11 + $0x18] sm:$0xff]
        %v1016 = vsel %vm964, %v954, 0
        %1018 = vmatpush.msra.mxu0 0.0
        %1019 = vmatpush.msra.mxu0 0.0
        %1020 = vmatpush.msra.mxu0 0.0
        %1021 = vmatpush.msra.mxu0 0.0
        %1022 = vmatpush.msra.mxu0 0.0
        %1023 = vmatpush.msra.mxu0 0.0
        %1024 = vmatpush.msra.mxu0 0.0
        %1025 = vmatpush.msra.mxu0 0.0
        %1026 = vmatpush.msra.mxu0 0.0
        %1027 = vmatpush.msra.mxu0 0.0
        %1028 = vmatpush.msra.mxu0 0.0
        %1029 = vmatpush.msra.mxu0 0.0
        %1030 = vmatpush.msra.mxu0 %v1014
        %1031 = vmatpush.msra.mxu0 %v1013
        %1032 = vmatpush.msra.mxu0 %v1012
        %1033 = vmatpush.msra.mxu0 %v1011
        %1034 = vmatmul.f32.gmra.mxu0 %v1016
        %v1035 = vpop.f32.mrf.mxu0
        %v1036 = vadd.f32 0.0, %v1035
        %1037 = vdwg.mxu0
        %v1038 = vadd.f32 %v1009, %v1036
        %v1039 = vld [vmem:[%s8] sm:$0x1]
        %v1041 = vperm.slane %v1039, 0
        %v1043 = vadd.f32 %v1038, %v1041
        %v1044 = vmul.f32 %v1043, 0.5
        %v1045 = vtanh.pop %v1044
        %v1046 = vmul.f32 %v1045, 0.5
        %v1047 = vadd.f32 %v1046, 0.5
        %1049 = vrot.lane.b32.xlu0 %v1047, 64
        %v1050 = vpop.permute.xlu0 %1049
        %v1052 = vadd.f32 %v1047, %v1050
        %v1053 = vmul.f32 %v1052, %v884
        %1054 = vrot.lane.b32.xlu0 %v931, 32
        %v1055 = vpop.permute.xlu0 %1054
        %v1057 = vmul.f32 %v1047, %v1055
        %1058 = vrot.lane.b32.xlu0 %v954, 96
        %v1059 = vpop.permute.xlu0 %1058
        %v1061 = vmul.f32 %v1047, %v1059
        %1063 = vrot.lane.b32.xlu0 %v1061, 64
        %v1064 = vpop.permute.xlu0 %1063
        %v1066 = vadd.f32 %v1057, %v1064
        %v1067 = vld [vmem:[#allocation15] sm:$0xff]
        %v1068 = vld [vmem:[#allocation15 + $0x8] sm:$0xff]
        %v1069 = vld [vmem:[#allocation15 + $0x10] sm:$0xff]
        %v1070 = vld [vmem:[#allocation15 + $0x18] sm:$0xff]
        %v1071 = vld [vmem:[#allocation17] sm:$0xff]
        %v1072 = vld [vmem:[#allocation17 + $0x8] sm:$0xff]
        %v1073 = vld [vmem:[#allocation17 + $0x10] sm:$0xff]
        %v1074 = vld [vmem:[#allocation17 + $0x18] sm:$0xff]
        %v1075 = vld [vmem:[%s15] sm:$0x1]
        %v1076 = vld [vmem:[%s16] sm:$0x1]
        %v1078 = vperm.slane %v1075, 0
        %1081 = vrot.lane.b32.xlu0 %v1066, 96
        %v1082 = vpop.permute.xlu0 %1081
        %v1083 = vsel %vm964, %v1082, 0
        %1085 = vmatpush.msra.mxu0 0.0
        %1086 = vmatpush.msra.mxu0 0.0
        %1087 = vmatpush.msra.mxu0 0.0
        %1088 = vmatpush.msra.mxu0 0.0
        %1089 = vmatpush.msra.mxu0 0.0
        %1090 = vmatpush.msra.mxu0 0.0
        %1091 = vmatpush.msra.mxu0 0.0
        %1092 = vmatpush.msra.mxu0 0.0
        %1093 = vmatpush.msra.mxu0 0.0
        %1094 = vmatpush.msra.mxu0 0.0
        %1095 = vmatpush.msra.mxu0 0.0
        %1096 = vmatpush.msra.mxu0 0.0
        %1097 = vmatpush.msra.mxu0 %v1070
        %1098 = vmatpush.msra.mxu0 %v1069
        %1099 = vmatpush.msra.mxu0 %v1068
        %1100 = vmatpush.msra.mxu0 %v1067
        %1101 = vmatmul.f32.gmra.mxu0 %v1083
        %v1102 = vpop.f32.mrf.mxu0
        %v1103 = vadd.f32 %v1078, %v1102
        %1104 = vdwg.mxu0
        %v1106 = vperm.slane %v1076, 0
        %1108 = vmatpush.msra.mxu0 0.0
        %1109 = vmatpush.msra.mxu0 0.0
        %1110 = vmatpush.msra.mxu0 0.0
        %1111 = vmatpush.msra.mxu0 0.0
        %1112 = vmatpush.msra.mxu0 0.0
        %1113 = vmatpush.msra.mxu0 0.0
        %1114 = vmatpush.msra.mxu0 0.0
        %1115 = vmatpush.msra.mxu0 0.0
        %1116 = vmatpush.msra.mxu0 0.0
        %1117 = vmatpush.msra.mxu0 0.0
        %1118 = vmatpush.msra.mxu0 0.0
        %1119 = vmatpush.msra.mxu0 0.0
        %1120 = vmatpush.msra.mxu0 %v1074
        %1121 = vmatpush.msra.mxu0 %v1073
        %1122 = vmatpush.msra.mxu0 %v1072
        %1123 = vmatpush.msra.mxu0 %v1071
        %1124 = vmatmul.f32.gmra.mxu0 %v966
        %v1125 = vpop.f32.mrf.mxu0
        %v1126 = vadd.f32 %v1106, %v1125
        %1127 = vdwg.mxu0
        %v1128 = vadd.f32 %v1103, %v1126
        %v1129 = vmul.f32 %v1128, 0.5
        %v1130 = vtanh.pop %v1129
        %v1131 = vmul.f32 %v1130, 0.5
        %v1132 = vadd.f32 %v1131, 0.5
        %1134 = vrot.lane.b32.xlu0 %v1126, 64
        %v1135 = vpop.permute.xlu0 %1134
        %v1137 = vmul.f32 %v1132, %v1135
        %1139 = vrot.lane.b32.xlu0 %v1137, 64
        %v1140 = vpop.permute.xlu0 %1139
        %v1142 = vadd.f32 %v1103, %v1140
        %v1143 = vtanh.pop %v1142
        %v1144 = vsub.f32 1.0, %v1132
        %1146 = vrot.lane.b32.xlu0 %v1143, 96
        %v1147 = vpop.permute.xlu0 %1146
        %v1149 = vmul.f32 %v1144, %v1147
        %1150 = vrot.lane.b32.xlu0 %v884, 32
        %v1151 = vpop.permute.xlu0 %1150
        %v1153 = vmul.f32 %v1132, %v1151
        %v1154 = vadd.f32 %v1149, %v1153
        %1156 = vrot.lane.b32.xlu0 %v1154, 96
        %v1157 = vpop.permute.xlu0 %1156
        %1159 = vst.msk [vmem:[%s883] sm:$0xff] %vm964, %v1157
        %v1160 = vld [vmem:[#allocation2] sm:$0xff]
        %v1162 = vsel %vm909, %v908, 0
        %1164 = vmatpush.msra.mxu0 0.0
        %1165 = vmatpush.msra.mxu0 0.0
        %1166 = vmatpush.msra.mxu0 0.0
        %1167 = vmatpush.msra.mxu0 0.0
        %1168 = vmatpush.msra.mxu0 0.0
        %1169 = vmatpush.msra.mxu0 0.0
        %1170 = vmatpush.msra.mxu0 0.0
        %1171 = vmatpush.msra.mxu0 0.0
        %1172 = vmatpush.msra.mxu0 0.0
        %1173 = vmatpush.msra.mxu0 0.0
        %1174 = vmatpush.msra.mxu0 0.0
        %1175 = vmatpush.msra.mxu0 0.0
        %1176 = vmatpush.msra.mxu0 0.0
        %1177 = vmatpush.msra.mxu0 0.0
        %1178 = vmatpush.msra.mxu0 0.0
        %1179 = vmatpush.msra.mxu0 %v1053
        %1180 = vmatmul.f32.gmra.mxu0 %v1162
        %v1181 = vpop.f32.mrf.mxu0
        %v1182 = vadd.f32 0.0, %v1181
        %1183 = vdwg.mxu0
        %v1184 = vadd.f32 %v1160, %v1182
        %1185 = vst.msk [vmem:[#allocation2] sm:$0xff] %vm964, %v1184
        // Predicated region
        $region129: #{triplet_imp_pallas.1} parent=87 // pred_check
          %p1186 = pneg %p669
        $region130: #{triplet_imp_pallas.1} parent=87 // pred_check_branch
          %1188 = sbr.rel (%p1186) target = $region132
        $region131: #{triplet_imp_pallas.1} parent=87 // pred_region
          %v1189 = vld [vmem:[#allocation3] sm:$0xff]
          %v1190 = vsel %vm909, %v908, 0.0
          %1191 = vadd.xlane.f32.xlu0 %v1190
          %v1192 = vpop.xlane.xlu0 %1191
          %v1193 = vadd.f32 %v1189, %v1192
          %vm1194 = vcmask 7168
          %1195 = vst.msk [vmem:[#allocation3] sm:$0xff] %vm1194, %v1193
        $region132: #{triplet_imp_pallas.1} parent=87 // pred_fallthru
          _
        %p1196 = scmp.eq.s32.totalorder %s41, 1
        %p1197 = pnand %p669, %p1196
        %p1198 = pneg %p1197
        // Predicated region
        $region133: #{triplet_imp_pallas.1} parent=87 // pred_check
          _
        $region134: #{triplet_imp_pallas.1} parent=87 // pred_check_branch
          %1200 = sbr.rel (%p1197) target = $region136
        $region135: #{triplet_imp_pallas.1} parent=87 // pred_region
          %v1201 = vld [vmem:[#allocation3] sm:$0xff]
          %v1202 = vmax.f32 %v1201, 1.0
          %v1203 = vrcp.pop %v1202
          %v1204 = vmul.f32 %v1202, %v1203
          %v1205 = vsub.f32 1.0, %v1204
          %v1206 = vmul.f32 %v1203, %v1205
          %v1207 = vadd.f32 %v1203, %v1206
          %vm1208 = vweird.f32 %v1202
          %vm1209 = vweird.f32 %v1203
          %vm1210 = vmor %vm1208, %vm1209
          %v1211 = vsel %vm1210, %v1203, %v1207
          %v1212 = vand.u32 2147483647, %v1202
          %vm1213 = vcmp.eq.f32.partialorder %v1212, 8.507059e+37
          %v1214 = vand.u32 %v1202, 2147483648
          %v1215 = vor.u32 1.1754944e-38, %v1214
          %v1216 = vsel %vm1213, %v1215, %v1211
          %v1217 = vmul.f32 1.0, %v1216
          %vm1218 = vcmask 7168
          %1219 = vst.msk [vmem:[#allocation3] sm:$0xff] %vm1218, %v1217
        $region136: #{triplet_imp_pallas.1} parent=87 // pred_fallthru
          _
        // Predicated region
        $region137: #{triplet_imp_pallas.1} parent=87 // pred_check
          %p1220 = pneg %p1196
        $region138: #{triplet_imp_pallas.1} parent=87 // pred_check_branch
          %1222 = sbr.rel (%p1220) target = $region140
        $region139: #{triplet_imp_pallas.1} parent=87 // pred_region
          %v1223 = vld [vmem:[#allocation2] sm:$0xff]
          %v1224 = vld [vmem:[#allocation3] sm:$0xff]
          %1226 = vset.pattern.permute.xlu0 0
          %1227 = vperm.xlu0 %1226, %v1224
          %v1228 = vpop.permute.xlu0 %1227
          %v1230 = vmul.f32 %v1223, %v1228
          %v1231 = vld [vmem:[#allocation12] sm:$0xff]
          %v1232 = vld [vmem:[#allocation12 + $0x8] sm:$0xff]
          %v1233 = vld [vmem:[#allocation12 + $0x10] sm:$0xff]
          %v1234 = vld [vmem:[#allocation12 + $0x18] sm:$0xff]
          %v1235 = vld [vmem:[#allocation14] sm:$0xff]
          %v1236 = vld [vmem:[#allocation14 + $0x8] sm:$0xff]
          %v1237 = vld [vmem:[#allocation14 + $0x10] sm:$0xff]
          %v1238 = vld [vmem:[#allocation14 + $0x18] sm:$0xff]
          %v1239 = vld [vmem:[%s11] sm:$0x1]
          %v1240 = vld [vmem:[%s12] sm:$0x1]
          %v1242 = vperm.slane %v1239, 0
          %v1245 = vsel %vm964, %v1230, 0
          %1247 = vmatpush.msra.mxu0 0.0
          %1248 = vmatpush.msra.mxu0 0.0
          %1249 = vmatpush.msra.mxu0 0.0
          %1250 = vmatpush.msra.mxu0 0.0
          %1251 = vmatpush.msra.mxu0 0.0
          %1252 = vmatpush.msra.mxu0 0.0
          %1253 = vmatpush.msra.mxu0 0.0
          %1254 = vmatpush.msra.mxu0 0.0
          %1255 = vmatpush.msra.mxu0 0.0
          %1256 = vmatpush.msra.mxu0 0.0
          %1257 = vmatpush.msra.mxu0 0.0
          %1258 = vmatpush.msra.mxu0 0.0
          %1259 = vmatpush.msra.mxu0 %v1234
          %1260 = vmatpush.msra.mxu0 %v1233
          %1261 = vmatpush.msra.mxu0 %v1232
          %1262 = vmatpush.msra.mxu0 %v1231
          %1263 = vmatmul.f32.gmra.mxu0 %v1245
          %v1264 = vpop.f32.mrf.mxu0
          %v1265 = vadd.f32 %v1242, %v1264
          %1266 = vdwg.mxu0
          %v1268 = vperm.slane %v1240, 0
          %v1271 = vsel %vm964, %v881, 0
          %1273 = vmatpush.msra.mxu0 0.0
          %1274 = vmatpush.msra.mxu0 0.0
          %1275 = vmatpush.msra.mxu0 0.0
          %1276 = vmatpush.msra.mxu0 0.0
          %1277 = vmatpush.msra.mxu0 0.0
          %1278 = vmatpush.msra.mxu0 0.0
          %1279 = vmatpush.msra.mxu0 0.0
          %1280 = vmatpush.msra.mxu0 0.0
          %1281 = vmatpush.msra.mxu0 0.0
          %1282 = vmatpush.msra.mxu0 0.0
          %1283 = vmatpush.msra.mxu0 0.0
          %1284 = vmatpush.msra.mxu0 0.0
          %1285 = vmatpush.msra.mxu0 %v1238
          %1286 = vmatpush.msra.mxu0 %v1237
          %1287 = vmatpush.msra.mxu0 %v1236
          %1288 = vmatpush.msra.mxu0 %v1235
          %1289 = vmatmul.f32.gmra.mxu0 %v1271
          %v1290 = vpop.f32.mrf.mxu0
          %v1291 = vadd.f32 %v1268, %v1290
          %1292 = vdwg.mxu0
          %v1293 = vadd.f32 %v1265, %v1291
          %v1294 = vmul.f32 %v1293, 0.5
          %v1295 = vtanh.pop %v1294
          %v1296 = vmul.f32 %v1295, 0.5
          %v1297 = vadd.f32 %v1296, 0.5
          %1299 = vrot.lane.b32.xlu0 %v1291, 64
          %v1300 = vpop.permute.xlu0 %1299
          %v1302 = vmul.f32 %v1297, %v1300
          %1304 = vrot.lane.b32.xlu0 %v1302, 64
          %v1305 = vpop.permute.xlu0 %1304
          %v1307 = vadd.f32 %v1265, %v1305
          %v1308 = vtanh.pop %v1307
          %v1309 = vsub.f32 1.0, %v1297
          %1311 = vrot.lane.b32.xlu0 %v1308, 96
          %v1312 = vpop.permute.xlu0 %1311
          %v1314 = vmul.f32 %v1309, %v1312
          %1315 = vrot.lane.b32.xlu0 %v881, 32
          %v1316 = vpop.permute.xlu0 %1315
          %v1318 = vmul.f32 %v1297, %v1316
          %v1319 = vadd.f32 %v1314, %v1318
          %1321 = vrot.lane.b32.xlu0 %v1319, 96
          %v1322 = vpop.permute.xlu0 %1321
          %1324 = vst.msk [vmem:[#allocation18] sm:$0xff] %vm964, %v1322
        $region140: #{triplet_imp_pallas.1} parent=87 // pred_fallthru
          _
        // Predicated region
        $region141: #{triplet_imp_pallas.1} parent=87 // pred_check
          %p1325 = pneg %p418
        $region142: #{triplet_imp_pallas.1} parent=87 // pred_check_branch
          %1327 = sbr.rel (%p1325) target = $region144
        $region143: #{triplet_imp_pallas.1} parent=87 // pred_region
          %1329 = vsyncadd [#allocation8], 0
          %s1331 = sshll.u32 [#allocation18], 4
          %s1332 = int_to_ptr.vmem [resolvable:$true] %s1331
          %s1333 = sshll.u32 %s17, 4
          %s1334 = int_to_ptr.hbm [resolvable:$true] %s1333
          %1336 = dma.vmem_to_hbm [thread:$0]  %s1332, 128, %s1334, [#allocation8]
        $region144: #{triplet_imp_pallas.1} parent=87 // pred_fallthru
          _
        // Predicated region
        $region145: #{triplet_imp_pallas.1} parent=87 // pred_check
          %p1337 = pneg %p439
        $region146: #{triplet_imp_pallas.1} parent=87 // pred_check_branch
          %1339 = sbr.rel (%p1337) target = $region148
        $region147: #{triplet_imp_pallas.1} parent=87 // pred_region
          %1341 = vsyncadd [#allocation20], 0
          %s1342 = sshll.u32 [#allocation19], 4
          %s1343 = int_to_ptr.vmem [resolvable:$true] %s1342
          %s1344 = sshll.u32 %s18, 4
          %s1345 = int_to_ptr.hbm [resolvable:$true] %s1344
          %1350 = dma.vmem_to_hbm [thread:$0]  %s1343, 256, %s1345, [#allocation20], 128, 128, 8
        $region148: #{triplet_imp_pallas.1} parent=87 // pred_fallthru
          _
        // Predicated region
        $region149: #{triplet_imp_pallas.1} parent=87 // pred_check
          %p1351 = pneg %p418
        $region150: #{triplet_imp_pallas.1} parent=87 // pred_check_branch
          %1353 = sbr.rel (%p1351) target = $region152
        $region151: #{triplet_imp_pallas.1} parent=87 // pred_region
          %1355 = dma.done [#allocation8], 128
        $region152: #{triplet_imp_pallas.1} parent=87 // pred_fallthru
          _
        // Predicated region
        $region153: #{triplet_imp_pallas.1} parent=87 // pred_check
          %p1356 = pneg %p439
        $region154: #{triplet_imp_pallas.1} parent=87 // pred_check_branch
          %1358 = sbr.rel (%p1356) target = $region156
        $region155: #{triplet_imp_pallas.1} parent=87 // pred_region
          %1360 = dma.done [#allocation20], 256
        $region156: #{triplet_imp_pallas.1} parent=87 // pred_fallthru
          _
      $region88: #{triplet_imp_pallas.1} parent=5 // pred_fallthru
        _
      %p1361 = scmp.le.s32.totalorder 2, %s31
      // Predicated region
      $region157: #{triplet_imp_pallas.1} parent=5 // pred_check
        %p1362 = pneg %p1361
      $region158: #{triplet_imp_pallas.1} parent=5 // pred_check_branch
        %1364 = sbr.rel (%p1362) target = $region160
      $region159: #{triplet_imp_pallas.1} parent=5 // pred_region
        %s1365 = ssub.s32 %s31, 2
      $region160: #{triplet_imp_pallas.1} parent=5 // pred_fallthru
        _
    $region6: #{triplet_imp_pallas.1} parent=1 // loop_footer
      %s35 = sadd.s32 1, %s31
    $region7: #{triplet_imp_pallas.1} parent=1 // loop_footer_branch
      %30 = sbr.rel target = $region3
    $region8: #{triplet_imp_pallas.1} parent=1 // loop_exit
      _
    %1366 = vsyncpa [#allocation7], 1
    %s1367 = scalar_lea.sflag [#allocation7], 1
    %1368 = vsyncpa %s1367, 1
    %1369 = vsyncpa [#allocation10], 1
    %1370 = vsyncpa [#allocation13], 1
    %1371 = vsyncpa [#allocation16], 1
    %1372 = vsyncpa [#allocation8], 1
    %s1373 = scalar_lea.sflag [#allocation8], 1
    %1374 = vsyncpa %s1373, 1
    %1375 = vsyncpa [#allocation20], 1

</llo_original>
